<compile_context>
chip_gen: v5e
topology: v5e:2x2
jax: 0.10.0
libtpu: 0.0.40
codegen_flags: <defaults>
</compile_context>

<pallas_src>
import functools

import jax
import jax.numpy as jnp
from jax.experimental import pallas as pl
from jax.experimental.pallas import tpu as pltpu

_EPS = 1e-5


# ----------------------------------------------------------------------------- helpers
def _round_up(x, m):
    return (x + m - 1) // m * m


def _pack_weights(ws):
    """Stack weights, zero-padded to a common (max_in, max_out)."""
    mi = max(w.shape[0] for w in ws)
    mo = max(w.shape[1] for w in ws)
    return jnp.stack([jnp.pad(w, ((0, mi - w.shape[0]), (0, mo - w.shape[1]))) for w in ws])


def _pack_rows(vs):
    """Stack 1-D-ish vectors as rows, zero-padded to a common width."""
    mw = max(v.size for v in vs)
    return jnp.concatenate(
        [jnp.pad(v.reshape(1, -1), ((0, 0), (0, mw - v.size))) for v in vs], axis=0)


# -------------------------------------------------------------------- in-kernel helpers
def _row_mask(tile_m, batch):
    """(tile_m, 1) f32 mask that zeroes batch-padding rows of the current tile."""
    row = jax.lax.broadcasted_iota(jnp.int32, (tile_m, 1), 0) + pl.program_id(0) * tile_m
    return (row < batch).astype(jnp.float32)


def _mlp(h, w_ref, b_ref, dims, *, bias_row0=0):
    """Chain of linears with ReLU between (no ReLU after the last one)."""
    n = len(dims)
    for li, (din, dout) in enumerate(dims):
        w = w_ref[li, :din, :dout]
        b = b_ref[bias_row0 + li: bias_row0 + li + 1, :dout]
        h = jnp.dot(h, w, preferred_element_type=jnp.float32) + b
        if li < n - 1:
            h = jnp.maximum(h, 0.0)
    return h


def _partial_stats(h, mask):
    """Per-tile (sum, sum_sq) over the batch dim, masking padded rows. -> (2, F)."""
    hm = h * mask
    s = jnp.sum(hm, axis=0, keepdims=True)
    ss = jnp.sum(hm * h, axis=0, keepdims=True)
    return jnp.concatenate([s, ss], axis=0)


def _bn_affine_from_stats(ps_ref, gamma, beta, batch, eps):
    """Reduce per-tile stats -> full-batch BN scale/shift (biased var, training mode)."""
    tot = jnp.sum(ps_ref[...], axis=0)                     # (2, F)
    mean = tot[0:1, :] * (1.0 / batch)
    msq = tot[1:2, :] * (1.0 / batch)
    var = jnp.maximum(msq - mean * mean, 0.0)
    scale = gamma * jax.lax.rsqrt(var + eps)
    return scale, beta - mean * scale


# ----------------------------------------------------------------------------- kernels
def _fused_kernel(x_ref, w_enc_ref, v_enc_ref, w5_ref, v_mid_ref, w_dec_ref, v_dec_ref,
                  en_ref, de_ref, *, batch, tile_m, enc_dims, dec_dims, e3, d1, eps):
    """Whole forward fused: valid when the (padded) batch fits in a single tile."""
    mask = _row_mask(tile_m, batch)
    inv_b = 1.0 / batch

    def bn(h, gamma, beta):
        hm = h * mask
        mean = jnp.sum(hm, axis=0, keepdims=True) * inv_b
        msq = jnp.sum(hm * h, axis=0, keepdims=True) * inv_b
        var = jnp.maximum(msq - mean * mean, 0.0)
        scale = gamma * jax.lax.rsqrt(var + eps)
        return h * scale + (beta - mean * scale)

    # encoder linears 1-4 (ReLU between) -> pre-BN activation
    h = _mlp(x_ref[...], w_enc_ref, v_enc_ref, enc_dims)
    # BN1 -> latent code
    en = bn(h, v_mid_ref[0:1, :e3], v_mid_ref[1:2, :e3])
    en_ref[...] = en
    # decoder linear5 -> BN2 -> ReLU
    h = jnp.dot(en, w5_ref[...], preferred_element_type=jnp.float32) + v_mid_ref[2:3, :d1]
    h = jnp.maximum(bn(h, v_dec_ref[0:1, :d1], v_dec_ref[1:2, :d1]), 0.0)
    # decoder linears 6-8 (ReLU between) -> reconstruction
    de_ref[...] = _mlp(h, w_dec_ref, v_dec_ref, dec_dims, bias_row0=2)


def _encoder_prebn_kernel(x_ref, w_ref, b_ref, h4_ref, ps_ref, *, batch, tile_m, dims):
    """Encoder linears 1-4 (ReLU between), pre-BN output + masked per-tile BN1 stats."""
    h = _mlp(x_ref[...], w_ref, b_ref, dims)
    h4_ref[...] = h
    ps_ref[0] = _partial_stats(h, _row_mask(tile_m, batch))


def _bn1_linear5_kernel(h4_ref, ps1_ref, w5_ref, vec_ref, en_ref, h5_ref, ps2_ref,
                        *, batch, tile_m, e3, d1, eps):
    """BN1 (batch stats from per-tile partials) -> en; decoder linear5 -> h5 + BN2 stats."""
    scale, shift = _bn_affine_from_stats(
        ps1_ref, vec_ref[0:1, :e3], vec_ref[1:2, :e3], batch, eps)
    en = h4_ref[...] * scale + shift
    en_ref[...] = en

    h5 = jnp.dot(en, w5_ref[...], preferred_element_type=jnp.float32) + vec_ref[2:3, :d1]
    h5_ref[...] = h5
    ps2_ref[0] = _partial_stats(h5, _row_mask(tile_m, batch))


def _bn2_decoder_kernel(h5_ref, ps2_ref, w_ref, vec_ref, de_ref, *, batch, d1, dims, eps):
    """BN2 + ReLU, then decoder linears 6-8 (ReLU between) -> reconstruction."""
    scale, shift = _bn_affine_from_stats(
        ps2_ref, vec_ref[0:1, :d1], vec_ref[1:2, :d1], batch, eps)
    h = jnp.maximum(h5_ref[...] * scale + shift, 0.0)
    de_ref[...] = _mlp(h, w_ref, vec_ref, dims, bias_row0=2)


# ----------------------------------------------------------------------------- forward
def autoencoder_forward(x, params, *, tile_m=1024):
    """x: (B, n_in) f32.  params: flat list (see init_params).  Returns (en, de)."""
    (w1, b1, w2, b2, w3, b3, w4, b4, g_en, be_en,
     w5, b5, g_de, be_de, w6, b6, w7, b7, w8, b8) = params

    B, n_in = x.shape
    e0, e1, e2, e3 = w1.shape[1], w2.shape[1], w3.shape[1], w4.shape[1]
    d1, d2, d3 = w5.shape[1], w6.shape[1], w7.shape[1]
    f32 = jnp.float32

    # ---- batch tiling: TM multiple of 8, bounded by tile_m; pad B to a whole tile ----
    tm = min(_round_up(tile_m, 8), _round_up(B, 8))
    b_pad = _round_up(B, tm)
    nt = b_pad // tm
    x_p = jnp.pad(x, ((0, b_pad - B), (0, 0))) if b_pad != B else x

    enc_dims = ((n_in, e0), (e0, e1), (e1, e2), (e2, e3))
    dec_dims = ((d1, d2), (d2, d3), (d3, n_in))

    # ---- pack parameters into a few DMA-friendly buffers ----
    w_enc = _pack_weights([w1, w2, w3, w4])       # (4, max_in, max_out)
    v_enc = _pack_rows([b1, b2, b3, b4])          # (4, max_width)
    v_mid = _pack_rows([g_en, be_en, b5])         # (3, max(e3, d1))
    w_dec = _pack_weights([w6, w7, w8])           # (3, max_in, max_out)
    v_dec = _pack_rows([g_de, be_de, b6, b7, b8])

    full = lambda a: pl.BlockSpec(a.shape, lambda i: (0,) * a.ndim)   # resident params
    row2d = lambda n: pl.BlockSpec((tm, n), lambda i: (i, 0))         # batch-tiled act.
    stats = lambda n: pl.BlockSpec((1, 2, n), lambda i: (i, 0, 0))    # per-tile BN stats
    cparams = pltpu.CompilerParams(dimension_semantics=("parallel",))

    if nt == 1:
        # ---- fast path: whole batch in one tile -> single fused kernel, no HBM ----
        # ---- round-trips for intermediate activations, single launch.         ----
        en_p, de_p = pl.pallas_call(
            functools.partial(_fused_kernel, batch=B, tile_m=tm, enc_dims=enc_dims,
                              dec_dims=dec_dims, e3=e3, d1=d1, eps=_EPS),
            grid=(1,),
            in_specs=[row2d(n_in), full(w_enc), full(v_enc),
                      full(w5), full(v_mid), full(w_dec), full(v_dec)],
            out_specs=(row2d(e3), row2d(n_in)),
            out_shape=(jax.ShapeDtypeStruct((b_pad, e3), f32),
                       jax.ShapeDtypeStruct((b_pad, n_in), f32)),
            compiler_params=cparams,
        )(x_p, w_enc, v_enc, w5, v_mid, w_dec, v_dec)
        return en_p[:B], de_p[:B]

    # ---- general path: exact full-batch BN via per-tile partial statistics ----
    # call 1: encoder up to pre-BN linear + per-tile BN1 stats
    h4_p, ps1 = pl.pallas_call(
        functools.partial(_encoder_prebn_kernel, batch=B, tile_m=tm, dims=enc_dims),
        grid=(nt,),
        in_specs=[row2d(n_in), full(w_enc), full(v_enc)],
        out_specs=(row2d(e3), stats(e3)),
        out_shape=(jax.ShapeDtypeStruct((b_pad, e3), f32),
                   jax.ShapeDtypeStruct((nt, 2, e3), f32)),
        compiler_params=cparams,
    )(x_p, w_enc, v_enc)

    # call 2: BN1 -> en ; decoder linear5 -> h5 + per-tile BN2 stats
    en_p, h5_p, ps2 = pl.pallas_call(
        functools.partial(_bn1_linear5_kernel, batch=B, tile_m=tm, e3=e3, d1=d1, eps=_EPS),
        grid=(nt,),
        in_specs=[row2d(e3), full(ps1), full(w5), full(v_mid)],
        out_specs=(row2d(e3), row2d(d1), stats(d1)),
        out_shape=(jax.ShapeDtypeStruct((b_pad, e3), f32),
                   jax.ShapeDtypeStruct((b_pad, d1), f32),
                   jax.ShapeDtypeStruct((nt, 2, d1), f32)),
        compiler_params=cparams,
    )(h4_p, ps1, w5, v_mid)

    # call 3: BN2 + ReLU + remaining decoder linears -> reconstruction
    de_p = pl.pallas_call(
        functools.partial(_bn2_decoder_kernel, batch=B, d1=d1, dims=dec_dims, eps=_EPS),
        grid=(nt,),
        in_specs=[row2d(d1), full(ps2), full(w_dec), full(v_dec)],
        out_specs=row2d(n_in),
        out_shape=jax.ShapeDtypeStruct((b_pad, n_in), f32),
        compiler_params=cparams,
    )(h5_p, ps2, w_dec, v_dec)

    return en_p[:B], de_p[:B]


# ----------------------------------------------------------------------------- params / ref
def init_params(key, n_in, encoder_units):
    """Deterministic init mimicking PyTorch Linear defaults: U(-1/sqrt(fan_in), 1/sqrt(fan_in))."""
    enc = encoder_units
    dec = list(reversed(encoder_units))

    def linear_params(key, fan_in, fan_out):
        kw, kb = jax.random.split(key)
        bound = 1.0 / jnp.sqrt(float(fan_in))
        w = jax.random.uniform(kw, (fan_in, fan_out), jnp.float32, -bound, bound)
        b = jax.random.uniform(kb, (1, fan_out), jnp.float32, -bound, bound)
        return w, b

    keys = jax.random.split(key, 8)
    w1, b1 = linear_params(keys[0], n_in, enc[0])
    w2, b2 = linear_params(keys[1], enc[0], enc[1])
    w3, b3 = linear_params(keys[2], enc[1], enc[2])
    w4, b4 = linear_params(keys[3], enc[2], enc[3])
    g_en = jnp.ones((1, enc[3]), jnp.float32)
    be_en = jnp.zeros((1, enc[3]), jnp.float32)
    w5, b5 = linear_params(keys[4], dec[0], dec[1])
    g_de = jnp.ones((1, dec[1]), jnp.float32)
    be_de = jnp.zeros((1, dec[1]), jnp.float32)
    w6, b6 = linear_params(keys[5], dec[1], dec[2])
    w7, b7 = linear_params(keys[6], dec[2], dec[3])
    w8, b8 = linear_params(keys[7], dec[3], n_in)

    return [w1, b1, w2, b2, w3, b3, w4, b4, g_en, be_en,
            w5, b5, g_de, be_de, w6, b6, w7, b7, w8, b8]


def reference_forward(x, params):
    """Pure-JAX reference (full-batch BN, training-mode forward)."""
    (w1, b1, w2, b2, w3, b3, w4, b4, g_en, be_en,
     w5, b5, g_de, be_de, w6, b6, w7, b7, w8, b8) = params

    def bn(h, g, b):
        m = jnp.mean(h, axis=0, keepdims=True)
        v = jnp.mean((h - m) ** 2, axis=0, keepdims=True)
        return (h - m) / jnp.sqrt(v + _EPS) * g + b

    h = jnp.maximum(x @ w1 + b1, 0.0)
    h = jnp.maximum(h @ w2 + b2, 0.0)
    h = jnp.maximum(h @ w3 + b3, 0.0)
    en = bn(h @ w4 + b4, g_en, be_en)
    h = en @ w5 + b5
    h = jnp.maximum(bn(h, g_de, be_de), 0.0)
    h = jnp.maximum(h @ w6 + b6, 0.0)
    h = jnp.maximum(h @ w7 + b7, 0.0)
    de = h @ w8 + b8
    return en, de


# ----------------------------------------------------------------------------- main
if __name__ == "__main__":
    n_in = 32
    encoder_units = [64, 32, 16, 8]
    batch = 40  # deliberately not a multiple of the small tile to exercise padding/masking

    key = jax.random.PRNGKey(0)
    kx, kp = jax.random.split(key)
    x = jax.random.normal(kx, (batch, n_in), jnp.float32)
    params = init_params(kp, n_in, encoder_units)

    en_ref, de_ref = reference_forward(x, params)

    # tm=16  -> 3 tiles: exercises the 3-call path with masked per-tile BN statistics
    # tm=1024 -> 1 tile: exercises the fully fused single-kernel fast path
    for tm in (16, 1024):
        fwd = jax.jit(functools.partial(autoencoder_forward, tile_m=tm))
        en, de = jax.block_until_ready(fwd(x, params))
        assert en.shape == (batch, encoder_units[-1])
        assert de.shape == (batch, n_in)
        assert jnp.allclose(en, en_ref, atol=1e-4, rtol=1e-4), f"en mismatch (tile_m={tm})"
        assert jnp.allclose(de, de_ref, atol=1e-4, rtol=1e-4), f"de mismatch (tile_m={tm})"

    print("KERNEL_OK")
</pallas_src>

<mosaic_0001>
module attributes {stable_mosaic.version = 11 : i64} {
  func.func @_encoder_prebn_kernel(%arg0: i32, %arg1: memref<16x32xf32, #tpu.memory_space<vmem>>, %arg2: memref<4x64x64xf32, #tpu.memory_space<vmem>>, %arg3: memref<4x64xf32, #tpu.memory_space<vmem>>, %arg4: memref<16x8xf32, #tpu.memory_space<vmem>>, %arg5: memref<1x2x8xf32, #tpu.memory_space<vmem>>) attributes {dimension_semantics = [#tpu.dimension_semantics<parallel>], iteration_bounds = array<i64: 3>, scalar_prefetch = 0 : i64, scratch_operands = 0 : i64, tpu.core_type = #tpu.core_type<tc>, window_params = [{transform_indices = @transform_0, window_bounds = array<i64: 16, 32>}, {pipeline_mode = #tpu.pipeline_mode<synchronous>, transform_indices = @transform_1, window_bounds = array<i64: 4, 64, 64>}, {pipeline_mode = #tpu.pipeline_mode<synchronous>, transform_indices = @transform_2, window_bounds = array<i64: 4, 64>}, {transform_indices = @transform_3, window_bounds = array<i64: 16, 8>}, {transform_indices = @transform_4, window_bounds = array<i64: 1, 2, 8>}]} {
    %c0 = arith.constant 0 : index
    %c0_0 = arith.constant 0 : index
    %0 = vector.load %arg1[%c0, %c0_0] : memref<16x32xf32, #tpu.memory_space<vmem>>, vector<16x32xf32>
    %c0_1 = arith.constant 0 : index
    %c0_2 = arith.constant 0 : index
    %c0_3 = arith.constant 0 : index
    %1 = vector.load %arg2[%c0_1, %c0_2, %c0_3] : memref<4x64x64xf32, #tpu.memory_space<vmem>>, vector<1x32x64xf32>
    %2 = vector.shape_cast %1 : vector<1x32x64xf32> to vector<32x64xf32>
    %c0_4 = arith.constant 0 : index
    %c0_5 = arith.constant 0 : index
    %3 = vector.load %arg3[%c0_4, %c0_5] : memref<4x64xf32, #tpu.memory_space<vmem>>, vector<1x64xf32>
    %cst = arith.constant dense<0.000000e+00> : vector<16x64xf32>
    %4 = tpu.matmul %0, %2, %cst {dimension_numbers = #tpu.dot_dimension_numbers<[1], [0], [0], [1], [0, 0, 1, 1], [], []>} : vector<16x32xf32>, vector<32x64xf32>, vector<16x64xf32> -> vector<16x64xf32>
    %5 = vector.broadcast %3 : vector<1x64xf32> to vector<16x64xf32>
    %6 = arith.addf %4, %5 : vector<16x64xf32>
    %cst_6 = arith.constant 0.000000e+00 : f32
    %7 = vector.broadcast %cst_6 : f32 to vector<16x64xf32>
    %8 = arith.maximumf %6, %7 : vector<16x64xf32>
    %c1 = arith.constant 1 : index
    %c0_7 = arith.constant 0 : index
    %c0_8 = arith.constant 0 : index
    %9 = vector.load %arg2[%c1, %c0_7, %c0_8] : memref<4x64x64xf32, #tpu.memory_space<vmem>>, vector<1x64x32xf32>
    %10 = vector.shape_cast %9 : vector<1x64x32xf32> to vector<64x32xf32>
    %c1_9 = arith.constant 1 : index
    %c0_10 = arith.constant 0 : index
    %11 = vector.load %arg3[%c1_9, %c0_10] : memref<4x64xf32, #tpu.memory_space<vmem>>, vector<1x32xf32>
    %cst_11 = arith.constant dense<0.000000e+00> : vector<16x32xf32>
    %12 = tpu.matmul %8, %10, %cst_11 {dimension_numbers = #tpu.dot_dimension_numbers<[1], [0], [0], [1], [0, 0, 1, 1], [], []>} : vector<16x64xf32>, vector<64x32xf32>, vector<16x32xf32> -> vector<16x32xf32>
    %13 = vector.broadcast %11 : vector<1x32xf32> to vector<16x32xf32>
    %14 = arith.addf %12, %13 : vector<16x32xf32>
    %cst_12 = arith.constant 0.000000e+00 : f32
    %15 = vector.broadcast %cst_12 : f32 to vector<16x32xf32>
    %16 = arith.maximumf %14, %15 : vector<16x32xf32>
    %c2 = arith.constant 2 : index
    %c0_13 = arith.constant 0 : index
    %c0_14 = arith.constant 0 : index
    %17 = vector.load %arg2[%c2, %c0_13, %c0_14] : memref<4x64x64xf32, #tpu.memory_space<vmem>>, vector<1x32x16xf32>
    %18 = vector.shape_cast %17 : vector<1x32x16xf32> to vector<32x16xf32>
    %c2_15 = arith.constant 2 : index
    %c0_16 = arith.constant 0 : index
    %19 = vector.load %arg3[%c2_15, %c0_16] : memref<4x64xf32, #tpu.memory_space<vmem>>, vector<1x16xf32>
    %cst_17 = arith.constant dense<0.000000e+00> : vector<16x16xf32>
    %20 = tpu.matmul %16, %18, %cst_17 {dimension_numbers = #tpu.dot_dimension_numbers<[1], [0], [0], [1], [0, 0, 1, 1], [], []>} : vector<16x32xf32>, vector<32x16xf32>, vector<16x16xf32> -> vector<16x16xf32>
    %21 = vector.broadcast %19 : vector<1x16xf32> to vector<16x16xf32>
    %22 = arith.addf %20, %21 : vector<16x16xf32>
    %cst_18 = arith.constant 0.000000e+00 : f32
    %23 = vector.broadcast %cst_18 : f32 to vector<16x16xf32>
    %24 = arith.maximumf %22, %23 : vector<16x16xf32>
    %c3 = arith.constant 3 : index
    %c0_19 = arith.constant 0 : index
    %c0_20 = arith.constant 0 : index
    %25 = vector.load %arg2[%c3, %c0_19, %c0_20] : memref<4x64x64xf32, #tpu.memory_space<vmem>>, vector<1x16x8xf32>
    %26 = vector.shape_cast %25 : vector<1x16x8xf32> to vector<16x8xf32>
    %c3_21 = arith.constant 3 : index
    %c0_22 = arith.constant 0 : index
    %27 = vector.load %arg3[%c3_21, %c0_22] : memref<4x64xf32, #tpu.memory_space<vmem>>, vector<1x8xf32>
    %cst_23 = arith.constant dense<0.000000e+00> : vector<16x8xf32>
    %28 = tpu.matmul %24, %26, %cst_23 {dimension_numbers = #tpu.dot_dimension_numbers<[1], [0], [0], [1], [0, 0, 1, 1], [], []>} : vector<16x16xf32>, vector<16x8xf32>, vector<16x8xf32> -> vector<16x8xf32>
    %29 = vector.broadcast %27 : vector<1x8xf32> to vector<16x8xf32>
    %30 = arith.addf %28, %29 : vector<16x8xf32>
    %c0_24 = arith.constant 0 : index
    %c0_25 = arith.constant 0 : index
    %31 = vector.load %arg4[%c0_24, %c0_25] : memref<16x8xf32, #tpu.memory_space<vmem>>, vector<16x8xf32>
    tpu.vector_store %arg4[%c0_24, %c0_25], %30 {strides = array<i32>} : memref<16x8xf32, #tpu.memory_space<vmem>>, vector<16x8xf32>,
    %32 = tpu.iota {dimensions = array<i32: 0>} : vector<16x1xi32>
    %c16_i32 = arith.constant 16 : i32
    %33 = arith.muli %arg0, %c16_i32 : i32
    %34 = vector.broadcast %33 : i32 to vector<16x1xi32>
    %35 = arith.addi %32, %34 : vector<16x1xi32>
    %c40_i32 = arith.constant 40 : i32
    %36 = vector.broadcast %c40_i32 : i32 to vector<16x1xi32>
    %37 = arith.cmpi slt, %35, %36 : vector<16x1xi32>
    %38 = arith.extui %37 : vector<16x1xi1> to vector<16x1xi32>
    %39 = arith.sitofp %38 : vector<16x1xi32> to vector<16x1xf32>
    %40 = vector.broadcast %39 : vector<16x1xf32> to vector<16x8xf32>
    %41 = arith.mulf %30, %40 : vector<16x8xf32>
    %cst_26 = arith.constant dense<0.000000e+00> : vector<8xf32>
    %42 = vector.multi_reduction <add>, %41, %cst_26 [0] : vector<16x8xf32> to vector<8xf32>
    %43 = vector.shape_cast %42 : vector<8xf32> to vector<1x8xf32>
    %44 = arith.mulf %41, %30 : vector<16x8xf32>
    %cst_27 = arith.constant dense<0.000000e+00> : vector<8xf32>
    %45 = vector.multi_reduction <add>, %44, %cst_27 [0] : vector<16x8xf32> to vector<8xf32>
    %46 = vector.shape_cast %45 : vector<8xf32> to vector<1x8xf32>
    %47 = tpu.concatenate %43, %46 in 0 : vector<1x8xf32>, vector<1x8xf32> -> vector<2x8xf32>
    %c0_28 = arith.constant 0 : index
    %c0_29 = arith.constant 0 : index
    %c0_30 = arith.constant 0 : index
    %48 = vector.load %arg5[%c0_28, %c0_29, %c0_30] : memref<1x2x8xf32, #tpu.memory_space<vmem>>, vector<1x2x8xf32>
    %49 = vector.shape_cast %48 : vector<1x2x8xf32> to vector<2x8xf32>
    %50 = vector.shape_cast %47 : vector<2x8xf32> to vector<1x2x8xf32>
    tpu.vector_store %arg5[%c0_28, %c0_29, %c0_30], %50 {strides = array<i32>} : memref<1x2x8xf32, #tpu.memory_space<vmem>>, vector<1x2x8xf32>,
    return
  }
  func.func @transform_0(%arg0: i32) -> (i32, i32) {
    %c0_i32 = arith.constant 0 : i32
    %c0_i32_0 = arith.constant 0 : i32
    return %arg0, %c0_i32 : i32, i32
  }
  func.func @transform_1(%arg0: i32) -> (i32, i32, i32) {
    %c0_i32 = arith.constant 0 : i32
    %c0_i32_0 = arith.constant 0 : i32
    %c0_i32_1 = arith.constant 0 : i32
    %c0_i32_2 = arith.constant 0 : i32
    return %c0_i32, %c0_i32_0, %c0_i32_1 : i32, i32, i32
  }
  func.func @transform_2(%arg0: i32) -> (i32, i32) {
    %c0_i32 = arith.constant 0 : i32
    %c0_i32_0 = arith.constant 0 : i32
    %c0_i32_1 = arith.constant 0 : i32
    return %c0_i32, %c0_i32_0 : i32, i32
  }
  func.func @transform_3(%arg0: i32) -> (i32, i32) {
    %c0_i32 = arith.constant 0 : i32
    %c0_i32_0 = arith.constant 0 : i32
    return %arg0, %c0_i32 : i32, i32
  }
  func.func @transform_4(%arg0: i32) -> (i32, i32, i32) {
    %c0_i32 = arith.constant 0 : i32
    %c0_i32_0 = arith.constant 0 : i32
    %c0_i32_1 = arith.constant 0 : i32
    return %arg0, %c0_i32, %c0_i32_0 : i32, i32, i32
  }
}

module attributes {stable_mosaic.version = 11 : i64} {
  func.func @_bn1_linear5_kernel(%arg0: i32, %arg1: memref<16x8xf32, #tpu.memory_space<vmem>>, %arg2: memref<3x2x8xf32, #tpu.memory_space<vmem>>, %arg3: memref<8x16xf32, #tpu.memory_space<vmem>>, %arg4: memref<3x16xf32, #tpu.memory_space<vmem>>, %arg5: memref<16x8xf32, #tpu.memory_space<vmem>>, %arg6: memref<16x16xf32, #tpu.memory_space<vmem>>, %arg7: memref<1x2x16xf32, #tpu.memory_space<vmem>>) attributes {dimension_semantics = [#tpu.dimension_semantics<parallel>], iteration_bounds = array<i64: 3>, scalar_prefetch = 0 : i64, scratch_operands = 0 : i64, tpu.core_type = #tpu.core_type<tc>, window_params = [{transform_indices = @transform_0, window_bounds = array<i64: 16, 8>}, {pipeline_mode = #tpu.pipeline_mode<synchronous>, transform_indices = @transform_1, window_bounds = array<i64: 3, 2, 8>}, {pipeline_mode = #tpu.pipeline_mode<synchronous>, transform_indices = @transform_2, window_bounds = array<i64: 8, 16>}, {pipeline_mode = #tpu.pipeline_mode<synchronous>, transform_indices = @transform_3, window_bounds = array<i64: 3, 16>}, {transform_indices = @transform_4, window_bounds = array<i64: 16, 8>}, {transform_indices = @transform_5, window_bounds = array<i64: 16, 16>}, {transform_indices = @transform_6, window_bounds = array<i64: 1, 2, 16>}]} {
    %c0 = arith.constant 0 : index
    %c0_0 = arith.constant 0 : index
    %0 = vector.load %arg4[%c0, %c0_0] : memref<3x16xf32, #tpu.memory_space<vmem>>, vector<1x8xf32>
    %c1 = arith.constant 1 : index
    %c0_1 = arith.constant 0 : index
    %1 = vector.load %arg4[%c1, %c0_1] : memref<3x16xf32, #tpu.memory_space<vmem>>, vector<1x8xf32>
    %c0_2 = arith.constant 0 : index
    %c0_3 = arith.constant 0 : index
    %c0_4 = arith.constant 0 : index
    %2 = vector.load %arg2[%c0_2, %c0_3, %c0_4] : memref<3x2x8xf32, #tpu.memory_space<vmem>>, vector<3x2x8xf32>
    %cst = arith.constant dense<0.000000e+00> : vector<2x8xf32>
    %3 = vector.multi_reduction <add>, %2, %cst [0] : vector<3x2x8xf32> to vector<2x8xf32>
    %4 = vector.extract_strided_slice %3 {offsets = [0, 0], sizes = [1, 8], strides = [1, 1]} : vector<2x8xf32> to vector<1x8xf32>
    %cst_5 = arith.constant 2.500000e-02 : f32
    %5 = vector.broadcast %cst_5 : f32 to vector<1x8xf32>
    %6 = arith.mulf %4, %5 : vector<1x8xf32>
    %7 = vector.extract_strided_slice %3 {offsets = [1, 0], sizes = [1, 8], strides = [1, 1]} : vector<2x8xf32> to vector<1x8xf32>
    %cst_6 = arith.constant 2.500000e-02 : f32
    %8 = vector.broadcast %cst_6 : f32 to vector<1x8xf32>
    %9 = arith.mulf %7, %8 : vector<1x8xf32>
    %10 = arith.mulf %6, %6 : vector<1x8xf32>
    %11 = arith.subf %9, %10 : vector<1x8xf32>
    %cst_7 = arith.constant 0.000000e+00 : f32
    %12 = vector.broadcast %cst_7 : f32 to vector<1x8xf32>
    %13 = arith.maximumf %11, %12 : vector<1x8xf32>
    %cst_8 = arith.constant 9.99999974E-6 : f32
    %14 = vector.broadcast %cst_8 : f32 to vector<1x8xf32>
    %15 = arith.addf %13, %14 : vector<1x8xf32>
    %16 = math.rsqrt %15 : vector<1x8xf32>
    %17 = arith.mulf %0, %16 : vector<1x8xf32>
    %18 = arith.mulf %6, %17 : vector<1x8xf32>
    %19 = arith.subf %1, %18 : vector<1x8xf32>
    %c0_9 = arith.constant 0 : index
    %c0_10 = arith.constant 0 : index
    %20 = vector.load %arg1[%c0_9, %c0_10] : memref<16x8xf32, #tpu.memory_space<vmem>>, vector<16x8xf32>
    %21 = vector.broadcast %17 : vector<1x8xf32> to vector<16x8xf32>
    %22 = arith.mulf %20, %21 : vector<16x8xf32>
    %23 = vector.broadcast %19 : vector<1x8xf32> to vector<16x8xf32>
    %24 = arith.addf %22, %23 : vector<16x8xf32>
    %c0_11 = arith.constant 0 : index
    %c0_12 = arith.constant 0 : index
    %25 = vector.load %arg5[%c0_11, %c0_12] : memref<16x8xf32, #tpu.memory_space<vmem>>, vector<16x8xf32>
    tpu.vector_store %arg5[%c0_11, %c0_12], %24 {strides = array<i32>} : memref<16x8xf32, #tpu.memory_space<vmem>>, vector<16x8xf32>,
    %c0_13 = arith.constant 0 : index
    %c0_14 = arith.constant 0 : index
    %26 = vector.load %arg3[%c0_13, %c0_14] : memref<8x16xf32, #tpu.memory_space<vmem>>, vector<8x16xf32>
    %cst_15 = arith.constant dense<0.000000e+00> : vector<16x16xf32>
    %27 = tpu.matmul %24, %26, %cst_15 {dimension_numbers = #tpu.dot_dimension_numbers<[1], [0], [0], [1], [0, 0, 1, 1], [], []>} : vector<16x8xf32>, vector<8x16xf32>, vector<16x16xf32> -> vector<16x16xf32>
    %c2 = arith.constant 2 : index
    %c0_16 = arith.constant 0 : index
    %28 = vector.load %arg4[%c2, %c0_16] : memref<3x16xf32, #tpu.memory_space<vmem>>, vector<1x16xf32>
    %29 = vector.broadcast %28 : vector<1x16xf32> to vector<16x16xf32>
    %30 = arith.addf %27, %29 : vector<16x16xf32>
    %c0_17 = arith.constant 0 : index
    %c0_18 = arith.constant 0 : index
    %31 = vector.load %arg6[%c0_17, %c0_18] : memref<16x16xf32, #tpu.memory_space<vmem>>, vector<16x16xf32>
    tpu.vector_store %arg6[%c0_17, %c0_18], %30 {strides = array<i32>} : memref<16x16xf32, #tpu.memory_space<vmem>>, vector<16x16xf32>,
    %32 = tpu.iota {dimensions = array<i32: 0>} : vector<16x1xi32>
    %c16_i32 = arith.constant 16 : i32
    %33 = arith.muli %arg0, %c16_i32 : i32
    %34 = vector.broadcast %33 : i32 to vector<16x1xi32>
    %35 = arith.addi %32, %34 : vector<16x1xi32>
    %c40_i32 = arith.constant 40 : i32
    %36 = vector.broadcast %c40_i32 : i32 to vector<16x1xi32>
    %37 = arith.cmpi slt, %35, %36 : vector<16x1xi32>
    %38 = arith.extui %37 : vector<16x1xi1> to vector<16x1xi32>
    %39 = arith.sitofp %38 : vector<16x1xi32> to vector<16x1xf32>
    %40 = vector.broadcast %39 : vector<16x1xf32> to vector<16x16xf32>
    %41 = arith.mulf %30, %40 : vector<16x16xf32>
    %cst_19 = arith.constant dense<0.000000e+00> : vector<16xf32>
    %42 = vector.multi_reduction <add>, %41, %cst_19 [0] : vector<16x16xf32> to vector<16xf32>
    %43 = vector.shape_cast %42 : vector<16xf32> to vector<1x16xf32>
    %44 = arith.mulf %41, %30 : vector<16x16xf32>
    %cst_20 = arith.constant dense<0.000000e+00> : vector<16xf32>
    %45 = vector.multi_reduction <add>, %44, %cst_20 [0] : vector<16x16xf32> to vector<16xf32>
    %46 = vector.shape_cast %45 : vector<16xf32> to vector<1x16xf32>
    %47 = tpu.concatenate %43, %46 in 0 : vector<1x16xf32>, vector<1x16xf32> -> vector<2x16xf32>
    %c0_21 = arith.constant 0 : index
    %c0_22 = arith.constant 0 : index
    %c0_23 = arith.constant 0 : index
    %48 = vector.load %arg7[%c0_21, %c0_22, %c0_23] : memref<1x2x16xf32, #tpu.memory_space<vmem>>, vector<1x2x16xf32>
    %49 = vector.shape_cast %48 : vector<1x2x16xf32> to vector<2x16xf32>
    %50 = vector.shape_cast %47 : vector<2x16xf32> to vector<1x2x16xf32>
    tpu.vector_store %arg7[%c0_21, %c0_22, %c0_23], %50 {strides = array<i32>} : memref<1x2x16xf32, #tpu.memory_space<vmem>>, vector<1x2x16xf32>,
    return
  }
  func.func @transform_0(%arg0: i32) -> (i32, i32) {
    %c0_i32 = arith.constant 0 : i32
    %c0_i32_0 = arith.constant 0 : i32
    return %arg0, %c0_i32 : i32, i32
  }
  func.func @transform_1(%arg0: i32) -> (i32, i32, i32) {
    %c0_i32 = arith.constant 0 : i32
    %c0_i32_0 = arith.constant 0 : i32
    %c0_i32_1 = arith.constant 0 : i32
    %c0_i32_2 = arith.constant 0 : i32
    return %c0_i32, %c0_i32_0, %c0_i32_1 : i32, i32, i32
  }
  func.func @transform_2(%arg0: i32) -> (i32, i32) {
    %c0_i32 = arith.constant 0 : i32
    %c0_i32_0 = arith.constant 0 : i32
    %c0_i32_1 = arith.constant 0 : i32
    return %c0_i32, %c0_i32_0 : i32, i32
  }
  func.func @transform_3(%arg0: i32) -> (i32, i32) {
    %c0_i32 = arith.constant 0 : i32
    %c0_i32_0 = arith.constant 0 : i32
    %c0_i32_1 = arith.constant 0 : i32
    return %c0_i32, %c0_i32_0 : i32, i32
  }
  func.func @transform_4(%arg0: i32) -> (i32, i32) {
    %c0_i32 = arith.constant 0 : i32
    %c0_i32_0 = arith.constant 0 : i32
    return %arg0, %c0_i32 : i32, i32
  }
  func.func @transform_5(%arg0: i32) -> (i32, i32) {
    %c0_i32 = arith.constant 0 : i32
    %c0_i32_0 = arith.constant 0 : i32
    return %arg0, %c0_i32 : i32, i32
  }
  func.func @transform_6(%arg0: i32) -> (i32, i32, i32) {
    %c0_i32 = arith.constant 0 : i32
    %c0_i32_0 = arith.constant 0 : i32
    %c0_i32_1 = arith.constant 0 : i32
    return %arg0, %c0_i32, %c0_i32_0 : i32, i32, i32
  }
}

module attributes {stable_mosaic.version = 11 : i64} {
  func.func @_bn2_decoder_kernel(%arg0: i32, %arg1: memref<16x16xf32, #tpu.memory_space<vmem>>, %arg2: memref<3x2x16xf32, #tpu.memory_space<vmem>>, %arg3: memref<3x64x64xf32, #tpu.memory_space<vmem>>, %arg4: memref<5x64xf32, #tpu.memory_space<vmem>>, %arg5: memref<16x32xf32, #tpu.memory_space<vmem>>) attributes {dimension_semantics = [#tpu.dimension_semantics<parallel>], iteration_bounds = array<i64: 3>, scalar_prefetch = 0 : i64, scratch_operands = 0 : i64, tpu.core_type = #tpu.core_type<tc>, window_params = [{transform_indices = @transform_0, window_bounds = array<i64: 16, 16>}, {pipeline_mode = #tpu.pipeline_mode<synchronous>, transform_indices = @transform_1, window_bounds = array<i64: 3, 2, 16>}, {pipeline_mode = #tpu.pipeline_mode<synchronous>, transform_indices = @transform_2, window_bounds = array<i64: 3, 64, 64>}, {pipeline_mode = #tpu.pipeline_mode<synchronous>, transform_indices = @transform_3, window_bounds = array<i64: 5, 64>}, {transform_indices = @transform_4, window_bounds = array<i64: 16, 32>}]} {
    %c0 = arith.constant 0 : index
    %c0_0 = arith.constant 0 : index
    %0 = vector.load %arg4[%c0, %c0_0] : memref<5x64xf32, #tpu.memory_space<vmem>>, vector<1x16xf32>
    %c1 = arith.constant 1 : index
    %c0_1 = arith.constant 0 : index
    %1 = vector.load %arg4[%c1, %c0_1] : memref<5x64xf32, #tpu.memory_space<vmem>>, vector<1x16xf32>
    %c0_2 = arith.constant 0 : index
    %c0_3 = arith.constant 0 : index
    %c0_4 = arith.constant 0 : index
    %2 = vector.load %arg2[%c0_2, %c0_3, %c0_4] : memref<3x2x16xf32, #tpu.memory_space<vmem>>, vector<3x2x16xf32>
    %cst = arith.constant dense<0.000000e+00> : vector<2x16xf32>
    %3 = vector.multi_reduction <add>, %2, %cst [0] : vector<3x2x16xf32> to vector<2x16xf32>
    %4 = vector.extract_strided_slice %3 {offsets = [0, 0], sizes = [1, 16], strides = [1, 1]} : vector<2x16xf32> to vector<1x16xf32>
    %cst_5 = arith.constant 2.500000e-02 : f32
    %5 = vector.broadcast %cst_5 : f32 to vector<1x16xf32>
    %6 = arith.mulf %4, %5 : vector<1x16xf32>
    %7 = vector.extract_strided_slice %3 {offsets = [1, 0], sizes = [1, 16], strides = [1, 1]} : vector<2x16xf32> to vector<1x16xf32>
    %cst_6 = arith.constant 2.500000e-02 : f32
    %8 = vector.broadcast %cst_6 : f32 to vector<1x16xf32>
    %9 = arith.mulf %7, %8 : vector<1x16xf32>
    %10 = arith.mulf %6, %6 : vector<1x16xf32>
    %11 = arith.subf %9, %10 : vector<1x16xf32>
    %cst_7 = arith.constant 0.000000e+00 : f32
    %12 = vector.broadcast %cst_7 : f32 to vector<1x16xf32>
    %13 = arith.maximumf %11, %12 : vector<1x16xf32>
    %cst_8 = arith.constant 9.99999974E-6 : f32
    %14 = vector.broadcast %cst_8 : f32 to vector<1x16xf32>
    %15 = arith.addf %13, %14 : vector<1x16xf32>
    %16 = math.rsqrt %15 : vector<1x16xf32>
    %17 = arith.mulf %0, %16 : vector<1x16xf32>
    %18 = arith.mulf %6, %17 : vector<1x16xf32>
    %19 = arith.subf %1, %18 : vector<1x16xf32>
    %c0_9 = arith.constant 0 : index
    %c0_10 = arith.constant 0 : index
    %20 = vector.load %arg1[%c0_9, %c0_10] : memref<16x16xf32, #tpu.memory_space<vmem>>, vector<16x16xf32>
    %21 = vector.broadcast %17 : vector<1x16xf32> to vector<16x16xf32>
    %22 = arith.mulf %20, %21 : vector<16x16xf32>
    %23 = vector.broadcast %19 : vector<1x16xf32> to vector<16x16xf32>
    %24 = arith.addf %22, %23 : vector<16x16xf32>
    %cst_11 = arith.constant 0.000000e+00 : f32
    %25 = vector.broadcast %cst_11 : f32 to vector<16x16xf32>
    %26 = arith.maximumf %24, %25 : vector<16x16xf32>
    %c0_12 = arith.constant 0 : index
    %c0_13 = arith.constant 0 : index
    %c0_14 = arith.constant 0 : index
    %27 = vector.load %arg3[%c0_12, %c0_13, %c0_14] : memref<3x64x64xf32, #tpu.memory_space<vmem>>, vector<1x16x32xf32>
    %28 = vector.shape_cast %27 : vector<1x16x32xf32> to vector<16x32xf32>
    %c2 = arith.constant 2 : index
    %c0_15 = arith.constant 0 : index
    %29 = vector.load %arg4[%c2, %c0_15] : memref<5x64xf32, #tpu.memory_space<vmem>>, vector<1x32xf32>
    %cst_16 = arith.constant dense<0.000000e+00> : vector<16x32xf32>
    %30 = tpu.matmul %26, %28, %cst_16 {dimension_numbers = #tpu.dot_dimension_numbers<[1], [0], [0], [1], [0, 0, 1, 1], [], []>} : vector<16x16xf32>, vector<16x32xf32>, vector<16x32xf32> -> vector<16x32xf32>
    %31 = vector.broadcast %29 : vector<1x32xf32> to vector<16x32xf32>
    %32 = arith.addf %30, %31 : vector<16x32xf32>
    %cst_17 = arith.constant 0.000000e+00 : f32
    %33 = vector.broadcast %cst_17 : f32 to vector<16x32xf32>
    %34 = arith.maximumf %32, %33 : vector<16x32xf32>
    %c1_18 = arith.constant 1 : index
    %c0_19 = arith.constant 0 : index
    %c0_20 = arith.constant 0 : index
    %35 = vector.load %arg3[%c1_18, %c0_19, %c0_20] : memref<3x64x64xf32, #tpu.memory_space<vmem>>, vector<1x32x64xf32>
    %36 = vector.shape_cast %35 : vector<1x32x64xf32> to vector<32x64xf32>
    %c3 = arith.constant 3 : index
    %c0_21 = arith.constant 0 : index
    %37 = vector.load %arg4[%c3, %c0_21] : memref<5x64xf32, #tpu.memory_space<vmem>>, vector<1x64xf32>
    %cst_22 = arith.constant dense<0.000000e+00> : vector<16x64xf32>
    %38 = tpu.matmul %34, %36, %cst_22 {dimension_numbers = #tpu.dot_dimension_numbers<[1], [0], [0], [1], [0, 0, 1, 1], [], []>} : vector<16x32xf32>, vector<32x64xf32>, vector<16x64xf32> -> vector<16x64xf32>
    %39 = vector.broadcast %37 : vector<1x64xf32> to vector<16x64xf32>
    %40 = arith.addf %38, %39 : vector<16x64xf32>
    %cst_23 = arith.constant 0.000000e+00 : f32
    %41 = vector.broadcast %cst_23 : f32 to vector<16x64xf32>
    %42 = arith.maximumf %40, %41 : vector<16x64xf32>
    %c2_24 = arith.constant 2 : index
    %c0_25 = arith.constant 0 : index
    %c0_26 = arith.constant 0 : index
    %43 = vector.load %arg3[%c2_24, %c0_25, %c0_26] : memref<3x64x64xf32, #tpu.memory_space<vmem>>, vector<1x64x32xf32>
    %44 = vector.shape_cast %43 : vector<1x64x32xf32> to vector<64x32xf32>
    %c4 = arith.constant 4 : index
    %c0_27 = arith.constant 0 : index
    %45 = vector.load %arg4[%c4, %c0_27] : memref<5x64xf32, #tpu.memory_space<vmem>>, vector<1x32xf32>
    %cst_28 = arith.constant dense<0.000000e+00> : vector<16x32xf32>
    %46 = tpu.matmul %42, %44, %cst_28 {dimension_numbers = #tpu.dot_dimension_numbers<[1], [0], [0], [1], [0, 0, 1, 1], [], []>} : vector<16x64xf32>, vector<64x32xf32>, vector<16x32xf32> -> vector<16x32xf32>
    %47 = vector.broadcast %45 : vector<1x32xf32> to vector<16x32xf32>
    %48 = arith.addf %46, %47 : vector<16x32xf32>
    %c0_29 = arith.constant 0 : index
    %c0_30 = arith.constant 0 : index
    %49 = vector.load %arg5[%c0_29, %c0_30] : memref<16x32xf32, #tpu.memory_space<vmem>>, vector<16x32xf32>
    tpu.vector_store %arg5[%c0_29, %c0_30], %48 {strides = array<i32>} : memref<16x32xf32, #tpu.memory_space<vmem>>, vector<16x32xf32>,
    return
  }
  func.func @transform_0(%arg0: i32) -> (i32, i32) {
    %c0_i32 = arith.constant 0 : i32
    %c0_i32_0 = arith.constant 0 : i32
    return %arg0, %c0_i32 : i32, i32
  }
  func.func @transform_1(%arg0: i32) -> (i32, i32, i32) {
    %c0_i32 = arith.constant 0 : i32
    %c0_i32_0 = arith.constant 0 : i32
    %c0_i32_1 = arith.constant 0 : i32
    %c0_i32_2 = arith.constant 0 : i32
    return %c0_i32, %c0_i32_0, %c0_i32_1 : i32, i32, i32
  }
  func.func @transform_2(%arg0: i32) -> (i32, i32, i32) {
    %c0_i32 = arith.constant 0 : i32
    %c0_i32_0 = arith.constant 0 : i32
    %c0_i32_1 = arith.constant 0 : i32
    %c0_i32_2 = arith.constant 0 : i32
    return %c0_i32, %c0_i32_0, %c0_i32_1 : i32, i32, i32
  }
  func.func @transform_3(%arg0: i32) -> (i32, i32) {
    %c0_i32 = arith.constant 0 : i32
    %c0_i32_0 = arith.constant 0 : i32
    %c0_i32_1 = arith.constant 0 : i32
    return %c0_i32, %c0_i32_0 : i32, i32
  }
  func.func @transform_4(%arg0: i32) -> (i32, i32) {
    %c0_i32 = arith.constant 0 : i32
    %c0_i32_0 = arith.constant 0 : i32
    return %arg0, %c0_i32 : i32, i32
  }
}

</mosaic_0001>

<llo_original>
// kernel: autoencoder_forward.4
$region0: #{autoencoder_forward.4}
  #allocation0 [shape = 'u32[]', space=smem, size = 0x4, offset = 0x4, fixed_abs, tag = 'smem constant byte address 0x4 - core index']
  #allocation1 [shape = 'u32[72,128]{1,0:T(1,128)}', space=vmem, size = 0x9000, scoped, tag = 'internal scratch']
  %s0 = inlined_call_operand.vmem [shape: f32[48,8], index: 0, kind: input, shape index: {}]
  %s1 = inlined_call_operand.vmem [shape: f32[3,2,8], index: 1, kind: input, shape index: {}]
  %s2 = inlined_call_operand.vmem [shape: f32[8,16], index: 2, kind: input, shape index: {}]
  %s3 = inlined_call_operand.vmem [shape: f32[3,16], index: 3, kind: input, shape index: {}]
  %s4 = inlined_call_operand.vmem [shape: f32[48,8], index: 4, kind: output, shape index: {0}]
  %s5 = inlined_call_operand.vmem [shape: f32[48,16], index: 5, kind: output, shape index: {1}]
  %s6 = inlined_call_operand.vmem [shape: f32[3,2,16], index: 6, kind: output, shape index: {2}]
  %7 = xla_tuple %s4, %s5, %s6
  %s8 = sld [smem:[#allocation0]]
  $region65: #{autoencoder_forward.4} parent=0
    _
  %s10 = ssub.s32 1, %s8
  %s11 = scalar_select 0, %s10, %s8
  loop: start=0, step=1, limit=5
  $region2: #{autoencoder_forward.4} parent=0 // loop_pre_header
    _
  $region3: #{autoencoder_forward.4} parent=0 // loop_header
    %s13 = sphi 0, %s17
    %p14 = scmp.ge.s32.totalorder %s13, 5
    %s23 = sphi 0, %s25
    %s26 = sphi 0, %s23
    %s27 = sphi 0, %s26
    %s43 = sphi 0, %s27
    %s47 = sphi 0, %s47
    %s49 = sphi 0, %s47
    %s50 = sphi 0, %s49
    %s64 = sphi 0, %s50
    %s68 = sphi 0, %s68
    %s70 = sphi 0, %s68
    %s71 = sphi 0, %s70
    %s85 = sphi 0, %s71
    %s89 = sphi 0, %s89
    %s91 = sphi 0, %s89
    %s92 = sphi 0, %s91
    %s106 = sphi 0, %s92
    %s112 = sphi 0, %s114
    %s115 = sphi 0, %s112
    %s116 = sphi 0, %s115
    %s132 = sphi 0, %s116
    %s138 = sphi 0, %s140
    %s141 = sphi 0, %s138
    %s142 = sphi 0, %s141
    %s158 = sphi 0, %s142
    %s164 = sphi 0, %s166
    %s167 = sphi 0, %s164
    %s168 = sphi 0, %s167
    %s184 = sphi 0, %s168
  $region4: #{autoencoder_forward.4} parent=0 // loop_header_branch
    %16 = sbr.rel (%p14) target = $region8
  $region5: #{autoencoder_forward.4} parent=0 // loop_body
    %s18 = ssub.s32 %s13, 1
    %s19 = ssub.s32 %s13, 2
    %s20 = sadd.s32 %s13, 1
    %s21 = ssub.s32 %s13, %s20
    %p22 = scmp.eq.s32.totalorder %s21, 0
    %s24 = sadd.s32 %s23, 1
    %s25 = scalar_select %p22, %s23, %s24
    %p28 = pneg %p22
    %p29 = scmp.eq.s32.totalorder %s13, 2
    %p30 = por %p28, %p29
    %p31 = scmp.ne.s32.totalorder %s23, %s26
    %p32 = scmp.eq.s32.totalorder %s13, 0
    %p33 = por %p31, %p32
    %p34 = scmp.ne.s32.totalorder %s23, %s26
    %p35 = scmp.eq.s32.totalorder %s18, 2
    %p36 = por %p34, %p35
    %p37 = scmp.ne.s32.totalorder %s26, %s27
    %p38 = scmp.eq.s32.totalorder %s18, 0
    %p39 = por %p37, %p38
    %p40 = scmp.ne.s32.totalorder %s26, %s27
    %p41 = scmp.eq.s32.totalorder %s19, 2
    %p42 = por %p40, %p41
    %p44 = scmp.ne.s32.totalorder %s27, %s43
    %p45 = scmp.eq.s32.totalorder %s19, 0
    %p46 = por %p44, %p45
    %s48 = sadd.s32 %s47, 1
    %p51 = scmp.eq.s32.totalorder %s13, 2
    %p52 = scmp.ne.s32.totalorder %s47, %s49
    %p53 = scmp.eq.s32.totalorder %s13, 0
    %p54 = por %p52, %p53
    %p55 = scmp.ne.s32.totalorder %s47, %s49
    %p56 = scmp.eq.s32.totalorder %s18, 2
    %p57 = por %p55, %p56
    %p58 = scmp.ne.s32.totalorder %s49, %s50
    %p59 = scmp.eq.s32.totalorder %s18, 0
    %p60 = por %p58, %p59
    %p61 = scmp.ne.s32.totalorder %s49, %s50
    %p62 = scmp.eq.s32.totalorder %s19, 2
    %p63 = por %p61, %p62
    %p65 = scmp.ne.s32.totalorder %s50, %s64
    %p66 = scmp.eq.s32.totalorder %s19, 0
    %p67 = por %p65, %p66
    %s69 = sadd.s32 %s68, 1
    %p72 = scmp.eq.s32.totalorder %s13, 2
    %p73 = scmp.ne.s32.totalorder %s68, %s70
    %p74 = scmp.eq.s32.totalorder %s13, 0
    %p75 = por %p73, %p74
    %p76 = scmp.ne.s32.totalorder %s68, %s70
    %p77 = scmp.eq.s32.totalorder %s18, 2
    %p78 = por %p76, %p77
    %p79 = scmp.ne.s32.totalorder %s70, %s71
    %p80 = scmp.eq.s32.totalorder %s18, 0
    %p81 = por %p79, %p80
    %p82 = scmp.ne.s32.totalorder %s70, %s71
    %p83 = scmp.eq.s32.totalorder %s19, 2
    %p84 = por %p82, %p83
    %p86 = scmp.ne.s32.totalorder %s71, %s85
    %p87 = scmp.eq.s32.totalorder %s19, 0
    %p88 = por %p86, %p87
    %s90 = sadd.s32 %s89, 1
    %p93 = scmp.eq.s32.totalorder %s13, 2
    %p94 = scmp.ne.s32.totalorder %s89, %s91
    %p95 = scmp.eq.s32.totalorder %s13, 0
    %p96 = por %p94, %p95
    %p97 = scmp.ne.s32.totalorder %s89, %s91
    %p98 = scmp.eq.s32.totalorder %s18, 2
    %p99 = por %p97, %p98
    %p100 = scmp.ne.s32.totalorder %s91, %s92
    %p101 = scmp.eq.s32.totalorder %s18, 0
    %p102 = por %p100, %p101
    %p103 = scmp.ne.s32.totalorder %s91, %s92
    %p104 = scmp.eq.s32.totalorder %s19, 2
    %p105 = por %p103, %p104
    %p107 = scmp.ne.s32.totalorder %s92, %s106
    %p108 = scmp.eq.s32.totalorder %s19, 0
    %p109 = por %p107, %p108
    %s110 = ssub.s32 %s13, %s20
    %p111 = scmp.eq.s32.totalorder %s110, 0
    %s113 = sadd.s32 %s112, 1
    %s114 = scalar_select %p111, %s112, %s113
    %p117 = pneg %p111
    %p118 = scmp.eq.s32.totalorder %s13, 2
    %p119 = por %p117, %p118
    %p120 = scmp.ne.s32.totalorder %s112, %s115
    %p121 = scmp.eq.s32.totalorder %s13, 0
    %p122 = por %p120, %p121
    %p123 = scmp.ne.s32.totalorder %s112, %s115
    %p124 = scmp.eq.s32.totalorder %s18, 2
    %p125 = por %p123, %p124
    %p126 = scmp.ne.s32.totalorder %s115, %s116
    %p127 = scmp.eq.s32.totalorder %s18, 0
    %p128 = por %p126, %p127
    %p129 = scmp.ne.s32.totalorder %s115, %s116
    %p130 = scmp.eq.s32.totalorder %s19, 2
    %p131 = por %p129, %p130
    %p133 = scmp.ne.s32.totalorder %s116, %s132
    %p134 = scmp.eq.s32.totalorder %s19, 0
    %p135 = por %p133, %p134
    %s136 = ssub.s32 %s13, %s20
    %p137 = scmp.eq.s32.totalorder %s136, 0
    %s139 = sadd.s32 %s138, 1
    %s140 = scalar_select %p137, %s138, %s139
    %p143 = pneg %p137
    %p144 = scmp.eq.s32.totalorder %s13, 2
    %p145 = por %p143, %p144
    %p146 = scmp.ne.s32.totalorder %s138, %s141
    %p147 = scmp.eq.s32.totalorder %s13, 0
    %p148 = por %p146, %p147
    %p149 = scmp.ne.s32.totalorder %s138, %s141
    %p150 = scmp.eq.s32.totalorder %s18, 2
    %p151 = por %p149, %p150
    %p152 = scmp.ne.s32.totalorder %s141, %s142
    %p153 = scmp.eq.s32.totalorder %s18, 0
    %p154 = por %p152, %p153
    %p155 = scmp.ne.s32.totalorder %s141, %s142
    %p156 = scmp.eq.s32.totalorder %s19, 2
    %p157 = por %p155, %p156
    %p159 = scmp.ne.s32.totalorder %s142, %s158
    %p160 = scmp.eq.s32.totalorder %s19, 0
    %p161 = por %p159, %p160
    %s162 = ssub.s32 %s13, %s20
    %p163 = scmp.eq.s32.totalorder %s162, 0
    %s165 = sadd.s32 %s164, 1
    %s166 = scalar_select %p163, %s164, %s165
    %p169 = pneg %p163
    %p170 = scmp.eq.s32.totalorder %s13, 2
    %p171 = por %p169, %p170
    %p172 = scmp.ne.s32.totalorder %s164, %s167
    %p173 = scmp.eq.s32.totalorder %s13, 0
    %p174 = por %p172, %p173
    %p175 = scmp.ne.s32.totalorder %s164, %s167
    %p176 = scmp.eq.s32.totalorder %s18, 2
    %p177 = por %p175, %p176
    %p178 = scmp.ne.s32.totalorder %s167, %s168
    %p179 = scmp.eq.s32.totalorder %s18, 0
    %p180 = por %p178, %p179
    %p181 = scmp.ne.s32.totalorder %s167, %s168
    %p182 = scmp.eq.s32.totalorder %s19, 2
    %p183 = por %p181, %p182
    %p185 = scmp.ne.s32.totalorder %s168, %s184
    %p186 = scmp.eq.s32.totalorder %s19, 0
    %p187 = por %p185, %p186
    %p188 = scmp.le.s32.totalorder 1, %s13
    %p189 = scmp.lt.s32.totalorder %s13, 4
    %p190 = pnand %p188, %p189
    %p191 = pneg %p190
    // Predicated region
    $region9: #{autoencoder_forward.4} parent=5 // pred_check
      _
    $region10: #{autoencoder_forward.4} parent=5 // pred_check_branch
      %193 = sbr.rel (%p190) target = $region12
    $region11: #{autoencoder_forward.4} parent=5 // pred_region
      %s194 = ssub.s32 %s13, 1
      // Predicated region
      $region13: #{autoencoder_forward.4} parent=11 // pred_check
        %p195 = pneg %p60
      $region14: #{autoencoder_forward.4} parent=11 // pred_check_branch
        %197 = sbr.rel (%p195) target = $region16
      $region15: #{autoencoder_forward.4} parent=11 // pred_region
        _
      $region16: #{autoencoder_forward.4} parent=11 // pred_fallthru
        _
      // Predicated region
      $region17: #{autoencoder_forward.4} parent=11 // pred_check
        %p198 = pneg %p81
      $region18: #{autoencoder_forward.4} parent=11 // pred_check_branch
        %200 = sbr.rel (%p198) target = $region20
      $region19: #{autoencoder_forward.4} parent=11 // pred_region
        _
      $region20: #{autoencoder_forward.4} parent=11 // pred_fallthru
        _
      // Predicated region
      $region21: #{autoencoder_forward.4} parent=11 // pred_check
        %p201 = pneg %p102
      $region22: #{autoencoder_forward.4} parent=11 // pred_check_branch
        %203 = sbr.rel (%p201) target = $region24
      $region23: #{autoencoder_forward.4} parent=11 // pred_region
        _
      $region24: #{autoencoder_forward.4} parent=11 // pred_fallthru
        _
    $region12: #{autoencoder_forward.4} parent=5 // pred_fallthru
      _
    %p204 = scmp.lt.s32.totalorder %s13, 3
    // Predicated region
    $region25: #{autoencoder_forward.4} parent=5 // pred_check
      %p205 = pneg %p204
    $region26: #{autoencoder_forward.4} parent=5 // pred_check_branch
      %207 = sbr.rel (%p205) target = $region28
    $region27: #{autoencoder_forward.4} parent=5 // pred_region
      // Predicated region
      $region29: #{autoencoder_forward.4} parent=27 // pred_check
        %p208 = pneg %p33
      $region30: #{autoencoder_forward.4} parent=27 // pred_check_branch
        %210 = sbr.rel (%p208) target = $region32
      $region31: #{autoencoder_forward.4} parent=27 // pred_region
        %s211 = smul.u32 2, %s13
        %p212 = scmp.lt.s32.totalorder %s211, 5
        %s213 = scalar_select %p212, %s211, 5
        %s214 = smul.addr %s213, 8
        %s215 = scalar_lea.vmem %s0, %s214
        %s216 = smul.u32 2, %s13
      $region32: #{autoencoder_forward.4} parent=27 // pred_fallthru
        _
    $region28: #{autoencoder_forward.4} parent=5 // pred_fallthru
      _
    %p217 = scmp.le.s32.totalorder 1, %s13
    %p218 = scmp.lt.s32.totalorder %s13, 4
    %p219 = pnand %p217, %p218
    %p220 = pneg %p219
    // Predicated region
    $region33: #{autoencoder_forward.4} parent=5 // pred_check
      _
    $region34: #{autoencoder_forward.4} parent=5 // pred_check_branch
      %222 = sbr.rel (%p219) target = $region36
    $region35: #{autoencoder_forward.4} parent=5 // pred_region
      %s223 = ssub.s32 %s13, 1
      %s224 = smul.u32 2, %s18
      %p225 = scmp.lt.s32.totalorder %s224, 5
      %s226 = scalar_select %p225, %s224, 5
      %s227 = smul.addr %s226, 8
      %s228 = scalar_lea.vmem %s0, %s227
      %p229 = pneg %p39
      %p230 = pneg %p36
      %p231 = pneg %p60
      %p232 = pneg %p57
      %p233 = pneg %p81
      %p234 = pneg %p78
      %p235 = pneg %p102
      %p236 = pneg %p99
      %p237 = pneg %p128
      %p238 = pneg %p125
      %s239 = smul.u32 2, %s18
      %p240 = scmp.lt.s32.totalorder %s239, 5
      %s241 = scalar_select %p240, %s239, 5
      %s242 = smul.addr %s241, 8
      %s243 = scalar_lea.vmem %s4, %s242
      %p244 = pneg %p154
      %p245 = pneg %p151
      %s246 = smul.u32 2, %s18
      %p247 = scmp.lt.s32.totalorder %s246, 5
      %s248 = scalar_select %p247, %s246, 5
      %s249 = smul.addr %s248, 8
      %s250 = scalar_lea.vmem %s5, %s249
      %p251 = pneg %p180
      %p252 = pneg %p177
      %p253 = scmp.lt.s32.totalorder %s18, 2
      %s254 = scalar_select %p253, %s18, 2
      %s255 = smul.addr %s254, 2
      %s256 = scalar_lea.vmem %s6, %s255
      %s257 = smul.u32 2, %s18
      %p258 = scmp.lt.s32.totalorder %s257, 5
      %s259 = scalar_select %p258, %s257, 5
      %s260 = smul.addr %s259, 8
      %s261 = scalar_lea.vmem %s0, %s260
      %s262 = smul.u32 2, %s18
      %s263 = smul.u32 2, %s18
      %p264 = scmp.lt.s32.totalorder %s263, 5
      %s265 = scalar_select %p264, %s263, 5
      %s266 = smul.addr %s265, 8
      %s267 = scalar_lea.vmem %s4, %s266
      %s268 = smul.u32 2, %s18
      %s269 = smul.u32 2, %s18
      %p270 = scmp.lt.s32.totalorder %s269, 5
      %s271 = scalar_select %p270, %s269, 5
      %s272 = smul.addr %s271, 8
      %s273 = scalar_lea.vmem %s5, %s272
      %s274 = smul.u32 2, %s18
      %p275 = scmp.lt.s32.totalorder %s18, 2
      %s276 = scalar_select %p275, %s18, 2
      %s277 = smul.addr %s276, 2
      %s278 = scalar_lea.vmem %s6, %s277
      %v279 = vld [vmem:[%s3] sm:$0x1]
      %v280 = vld [vmem:[%s3 + $0x1] sm:$0x1]
      %v281 = vld [vmem:[%s1] sm:$0x3]
      %v282 = vld [vmem:[%s1 + $0x2] sm:$0x3]
      %v283 = vld [vmem:[%s1 + $0x4] sm:$0x3]
      %vm284 = vcmask 58368
      %v285 = vsel %vm284, %v281, 0.0
      %v286 = vsel %vm284, %v282, 0.0
      %v287 = vadd.f32 %v285, %v286
      %v288 = vsel %vm284, %v283, 0.0
      %v289 = vadd.f32 %v287, %v288
      %v290 = vmul.f32 %v289, 0.025
      %v291 = vmul.f32 %v290, %v290
      %v293 = vrot.slane %v291, 7
      %v295 = vsub.f32 %v290, %v293
      %v296 = vmax.f32 %v295, 0.0
      %v297 = vadd.f32 %v296, 1e-05
      %v298 = vrsqrt.pop %v297
      %v299 = vmul.f32 %v298, %v297
      %v300 = vmul.f32 %v299, %v298
      %v301 = vmul.f32 0.5, %v300
      %v302 = vsub.f32 1.5, %v301
      %v303 = vmul.f32 %v298, %v302
      %vm304 = vweird.f32 %v297
      %vm305 = vweird.f32 %v298
      %vm306 = vmor %vm304, %vm305
      %v307 = vsel %vm306, %v298, %v303
      %v309 = vrot.slane %v307, 1
      %v311 = vmul.f32 %v279, %v309
      %v312 = vmul.f32 %v290, %v311
      %v313 = vsub.f32 %v280, %v312
      %v314 = vld [vmem:[%s261] sm:$0xff]
      %v315 = vld [vmem:[%s261 + $0x8] sm:$0xff]
      %v316 = vperm.slane %v311, 0
      %v317 = vmul.f32 %v314, %v316
      %v318 = vmul.f32 %v315, %v316
      %v319 = vperm.slane %v313, 0
      %v320 = vadd.f32 %v317, %v319
      %v321 = vadd.f32 %v318, %v319
      %vm322 = vcmask 64512
      %323 = vst.msk [vmem:[%s267] sm:$0xff] %vm322, %v320
      %324 = vst.msk [vmem:[%s267 + $0x8] sm:$0xff] %vm322, %v321
      %v325 = vld [vmem:[%s2] sm:$0xff]
      %v326 = vld [vmem:[%s3 + $0x2] sm:$0x1]
      %v327 = vperm.slane %v326, 0
      %v329 = vsel %vm322, %v320, 0
      %v332 = vsel %vm322, %v321, 0
      %334 = vmatpush.msra.mxu0 0.0
      %335 = vmatpush.msra.mxu0 0.0
      %336 = vmatpush.msra.mxu0 0.0
      %337 = vmatpush.msra.mxu0 0.0
      %338 = vmatpush.msra.mxu0 0.0
      %339 = vmatpush.msra.mxu0 0.0
      %340 = vmatpush.msra.mxu0 0.0
      %341 = vmatpush.msra.mxu0 0.0
      %342 = vmatpush.msra.mxu0 0.0
      %343 = vmatpush.msra.mxu0 0.0
      %344 = vmatpush.msra.mxu0 0.0
      %345 = vmatpush.msra.mxu0 0.0
      %346 = vmatpush.msra.mxu0 0.0
      %347 = vmatpush.msra.mxu0 0.0
      %348 = vmatpush.msra.mxu0 0.0
      %349 = vmatpush.msra.mxu0 %v325
      %350 = vmatmul.f32.gmra.mxu0 %v329
      %v351 = vpop.f32.mrf.mxu0
      %v352 = vadd.f32 %v327, %v351
      %353 = vmatmul.f32.gmra.mxu0 %v332
      %v354 = vpop.f32.mrf.mxu0
      %v355 = vadd.f32 %v327, %v354
      %356 = vdwg.mxu0
      %vm357 = vcmask 130048
      %358 = vst.msk [vmem:[%s273] sm:$0xff] %vm357, %v352
      %359 = vst.msk [vmem:[%s273 + $0x8] sm:$0xff] %vm357, %v355
      %v360 = vlaneseq
      %v361 = vshrl.u32 %v360, 7
      %v362 = vadd.s32 %v361, 8
      %s363 = smul.u32 %s18, 16
      %v364 = vstv %s363
      %v365 = vadd.s32 %v361, %v364
      %v366 = vadd.s32 %v362, %v364
      %vm367 = vcmp.lt.s32.totalorder %v365, 40
      %vm368 = vcmp.lt.s32.totalorder %v366, 40
      %v369 = vsel %vm367, 1, 0
      %v370 = vsel %vm368, 1, 0
      %v371 = vcvt.s32.f32 %v369
      %v372 = vcvt.s32.f32 %v370
      %v373 = vmul.f32 %v352, %v371
      %v374 = vmul.f32 %v355, %v372
      %v375 = vsel %vm357, %v373, 0.0
      %v376 = vsel %vm357, %v374, 0.0
      %v377 = vadd.f32 %v375, %v376
      %v378 = vrot.slane %v377, 4
      %v379 = vadd.f32 %v377, %v378
      %v380 = vrot.slane %v379, 2
      %v381 = vadd.f32 %v379, %v380
      %v382 = vrot.slane %v381, 1
      %v383 = vadd.f32 %v381, %v382
      %v384 = vmul.f32 %v373, %v352
      %v385 = vmul.f32 %v374, %v355
      %v386 = vsel %vm357, %v384, 0.0
      %v387 = vsel %vm357, %v385, 0.0
      %v388 = vadd.f32 %v386, %v387
      %v389 = vrot.slane %v388, 4
      %v390 = vadd.f32 %v388, %v389
      %v391 = vrot.slane %v390, 2
      %v392 = vadd.f32 %v390, %v391
      %v393 = vrot.slane %v392, 1
      %v394 = vadd.f32 %v392, %v393
      %vm395 = vcmask 1040384
      %v396 = vsel %vm395, %v383, %v394
      %vm397 = vcmask 123904
      %398 = vst.msk [vmem:[%s278] sm:$0x3] %vm397, %v396
      %s399 = smul.u32 2, %s18
      %p400 = scmp.lt.s32.totalorder %s399, 5
      %s401 = scalar_select %p400, %s399, 5
      %s402 = smul.addr %s401, 8
      %s403 = scalar_lea.vmem %s4, %s402
      %s404 = smul.u32 2, %s18
      %p405 = scmp.lt.s32.totalorder %s404, 5
      %s406 = scalar_select %p405, %s404, 5
      %s407 = smul.addr %s406, 8
      %s408 = scalar_lea.vmem %s5, %s407
      %p409 = scmp.lt.s32.totalorder %s18, 2
      %s410 = scalar_select %p409, %s18, 2
      %s411 = smul.addr %s410, 2
      %s412 = scalar_lea.vmem %s6, %s411
      // Predicated region
      $region37: #{autoencoder_forward.4} parent=35 // pred_check
        %p413 = pneg %p125
      $region38: #{autoencoder_forward.4} parent=35 // pred_check_branch
        %415 = sbr.rel (%p413) target = $region40
      $region39: #{autoencoder_forward.4} parent=35 // pred_region
        %s416 = smul.u32 2, %s18
      $region40: #{autoencoder_forward.4} parent=35 // pred_fallthru
        _
      // Predicated region
      $region41: #{autoencoder_forward.4} parent=35 // pred_check
        %p417 = pneg %p151
      $region42: #{autoencoder_forward.4} parent=35 // pred_check_branch
        %419 = sbr.rel (%p417) target = $region44
      $region43: #{autoencoder_forward.4} parent=35 // pred_region
        %s420 = smul.u32 2, %s18
      $region44: #{autoencoder_forward.4} parent=35 // pred_fallthru
        _
      // Predicated region
      $region45: #{autoencoder_forward.4} parent=35 // pred_check
        %p421 = pneg %p177
      $region46: #{autoencoder_forward.4} parent=35 // pred_check_branch
        %423 = sbr.rel (%p421) target = $region48
      $region47: #{autoencoder_forward.4} parent=35 // pred_region
        _
      $region48: #{autoencoder_forward.4} parent=35 // pred_fallthru
        _
    $region36: #{autoencoder_forward.4} parent=5 // pred_fallthru
      _
    %p424 = scmp.le.s32.totalorder 2, %s13
    // Predicated region
    $region49: #{autoencoder_forward.4} parent=5 // pred_check
      %p425 = pneg %p424
    $region50: #{autoencoder_forward.4} parent=5 // pred_check_branch
      %427 = sbr.rel (%p425) target = $region52
    $region51: #{autoencoder_forward.4} parent=5 // pred_region
      %s428 = ssub.s32 %s13, 2
      // Predicated region
      $region53: #{autoencoder_forward.4} parent=51 // pred_check
        %p429 = pneg %p131
      $region54: #{autoencoder_forward.4} parent=51 // pred_check_branch
        %431 = sbr.rel (%p429) target = $region56
      $region55: #{autoencoder_forward.4} parent=51 // pred_region
        %s432 = smul.u32 2, %s19
        %p433 = scmp.lt.s32.totalorder %s432, 5
        %s434 = scalar_select %p433, %s432, 5
        %s435 = smul.addr %s434, 8
        %s436 = scalar_lea.vmem %s4, %s435
      $region56: #{autoencoder_forward.4} parent=51 // pred_fallthru
        _
      // Predicated region
      $region57: #{autoencoder_forward.4} parent=51 // pred_check
        %p437 = pneg %p157
      $region58: #{autoencoder_forward.4} parent=51 // pred_check_branch
        %439 = sbr.rel (%p437) target = $region60
      $region59: #{autoencoder_forward.4} parent=51 // pred_region
        %s440 = smul.u32 2, %s19
        %p441 = scmp.lt.s32.totalorder %s440, 5
        %s442 = scalar_select %p441, %s440, 5
        %s443 = smul.addr %s442, 8
        %s444 = scalar_lea.vmem %s5, %s443
      $region60: #{autoencoder_forward.4} parent=51 // pred_fallthru
        _
      // Predicated region
      $region61: #{autoencoder_forward.4} parent=51 // pred_check
        %p445 = pneg %p183
      $region62: #{autoencoder_forward.4} parent=51 // pred_check_branch
        %447 = sbr.rel (%p445) target = $region64
      $region63: #{autoencoder_forward.4} parent=51 // pred_region
        %p448 = scmp.lt.s32.totalorder %s19, 2
        %s449 = scalar_select %p448, %s19, 2
        %s450 = smul.addr %s449, 2
        %s451 = scalar_lea.vmem %s6, %s450
      $region64: #{autoencoder_forward.4} parent=51 // pred_fallthru
        _
    $region52: #{autoencoder_forward.4} parent=5 // pred_fallthru
      _
  $region6: #{autoencoder_forward.4} parent=0 // loop_footer
    %s17 = sadd.s32 1, %s13
  $region7: #{autoencoder_forward.4} parent=0 // loop_footer_branch
    %12 = sbr.rel target = $region3
  $region8: #{autoencoder_forward.4} parent=0 // loop_exit
    _

// kernel: autoencoder_forward.5
$region0: #{autoencoder_forward.5}
  #allocation0 [shape = 'u32[]', space=smem, size = 0x4, offset = 0x4, fixed_abs, tag = 'smem constant byte address 0x4 - core index']
  #allocation1 [shape = 'u32[72,128]{1,0:T(1,128)}', space=vmem, size = 0x9000, scoped, tag = 'internal scratch']
  %s0 = inlined_call_operand.vmem [shape: f32[48,16], index: 0, kind: input, shape index: {}]
  %s1 = inlined_call_operand.vmem [shape: f32[3,2,16], index: 1, kind: input, shape index: {}]
  %s2 = inlined_call_operand.vmem [shape: f32[3,64,64], index: 2, kind: input, shape index: {}]
  %s3 = inlined_call_operand.vmem [shape: f32[5,64], index: 3, kind: input, shape index: {}]
  %s4 = inlined_call_operand.vmem [shape: f32[48,32], index: 4, kind: output, shape index: {}]
  %s5 = sld [smem:[#allocation0]]
  $region49: #{autoencoder_forward.5} parent=0
    _
  %s7 = ssub.s32 1, %s5
  %s8 = scalar_select 0, %s7, %s5
  loop: start=0, step=1, limit=5
  $region2: #{autoencoder_forward.5} parent=0 // loop_pre_header
    _
  $region3: #{autoencoder_forward.5} parent=0 // loop_header
    %s10 = sphi 0, %s14
    %p11 = scmp.ge.s32.totalorder %s10, 5
    %s20 = sphi 0, %s22
    %s23 = sphi 0, %s20
    %s24 = sphi 0, %s23
    %s40 = sphi 0, %s24
    %s44 = sphi 0, %s44
    %s46 = sphi 0, %s44
    %s47 = sphi 0, %s46
    %s61 = sphi 0, %s47
    %s65 = sphi 0, %s65
    %s67 = sphi 0, %s65
    %s68 = sphi 0, %s67
    %s82 = sphi 0, %s68
    %s86 = sphi 0, %s86
    %s88 = sphi 0, %s86
    %s89 = sphi 0, %s88
    %s103 = sphi 0, %s89
    %s109 = sphi 0, %s111
    %s112 = sphi 0, %s109
    %s113 = sphi 0, %s112
    %s129 = sphi 0, %s113
  $region4: #{autoencoder_forward.5} parent=0 // loop_header_branch
    %13 = sbr.rel (%p11) target = $region8
  $region5: #{autoencoder_forward.5} parent=0 // loop_body
    %s15 = ssub.s32 %s10, 1
    %s16 = ssub.s32 %s10, 2
    %s17 = sadd.s32 %s10, 1
    %s18 = ssub.s32 %s10, %s17
    %p19 = scmp.eq.s32.totalorder %s18, 0
    %s21 = sadd.s32 %s20, 1
    %s22 = scalar_select %p19, %s20, %s21
    %p25 = pneg %p19
    %p26 = scmp.eq.s32.totalorder %s10, 2
    %p27 = por %p25, %p26
    %p28 = scmp.ne.s32.totalorder %s20, %s23
    %p29 = scmp.eq.s32.totalorder %s10, 0
    %p30 = por %p28, %p29
    %p31 = scmp.ne.s32.totalorder %s20, %s23
    %p32 = scmp.eq.s32.totalorder %s15, 2
    %p33 = por %p31, %p32
    %p34 = scmp.ne.s32.totalorder %s23, %s24
    %p35 = scmp.eq.s32.totalorder %s15, 0
    %p36 = por %p34, %p35
    %p37 = scmp.ne.s32.totalorder %s23, %s24
    %p38 = scmp.eq.s32.totalorder %s16, 2
    %p39 = por %p37, %p38
    %p41 = scmp.ne.s32.totalorder %s24, %s40
    %p42 = scmp.eq.s32.totalorder %s16, 0
    %p43 = por %p41, %p42
    %s45 = sadd.s32 %s44, 1
    %p48 = scmp.eq.s32.totalorder %s10, 2
    %p49 = scmp.ne.s32.totalorder %s44, %s46
    %p50 = scmp.eq.s32.totalorder %s10, 0
    %p51 = por %p49, %p50
    %p52 = scmp.ne.s32.totalorder %s44, %s46
    %p53 = scmp.eq.s32.totalorder %s15, 2
    %p54 = por %p52, %p53
    %p55 = scmp.ne.s32.totalorder %s46, %s47
    %p56 = scmp.eq.s32.totalorder %s15, 0
    %p57 = por %p55, %p56
    %p58 = scmp.ne.s32.totalorder %s46, %s47
    %p59 = scmp.eq.s32.totalorder %s16, 2
    %p60 = por %p58, %p59
    %p62 = scmp.ne.s32.totalorder %s47, %s61
    %p63 = scmp.eq.s32.totalorder %s16, 0
    %p64 = por %p62, %p63
    %s66 = sadd.s32 %s65, 1
    %p69 = scmp.eq.s32.totalorder %s10, 2
    %p70 = scmp.ne.s32.totalorder %s65, %s67
    %p71 = scmp.eq.s32.totalorder %s10, 0
    %p72 = por %p70, %p71
    %p73 = scmp.ne.s32.totalorder %s65, %s67
    %p74 = scmp.eq.s32.totalorder %s15, 2
    %p75 = por %p73, %p74
    %p76 = scmp.ne.s32.totalorder %s67, %s68
    %p77 = scmp.eq.s32.totalorder %s15, 0
    %p78 = por %p76, %p77
    %p79 = scmp.ne.s32.totalorder %s67, %s68
    %p80 = scmp.eq.s32.totalorder %s16, 2
    %p81 = por %p79, %p80
    %p83 = scmp.ne.s32.totalorder %s68, %s82
    %p84 = scmp.eq.s32.totalorder %s16, 0
    %p85 = por %p83, %p84
    %s87 = sadd.s32 %s86, 1
    %p90 = scmp.eq.s32.totalorder %s10, 2
    %p91 = scmp.ne.s32.totalorder %s86, %s88
    %p92 = scmp.eq.s32.totalorder %s10, 0
    %p93 = por %p91, %p92
    %p94 = scmp.ne.s32.totalorder %s86, %s88
    %p95 = scmp.eq.s32.totalorder %s15, 2
    %p96 = por %p94, %p95
    %p97 = scmp.ne.s32.totalorder %s88, %s89
    %p98 = scmp.eq.s32.totalorder %s15, 0
    %p99 = por %p97, %p98
    %p100 = scmp.ne.s32.totalorder %s88, %s89
    %p101 = scmp.eq.s32.totalorder %s16, 2
    %p102 = por %p100, %p101
    %p104 = scmp.ne.s32.totalorder %s89, %s103
    %p105 = scmp.eq.s32.totalorder %s16, 0
    %p106 = por %p104, %p105
    %s107 = ssub.s32 %s10, %s17
    %p108 = scmp.eq.s32.totalorder %s107, 0
    %s110 = sadd.s32 %s109, 1
    %s111 = scalar_select %p108, %s109, %s110
    %p114 = pneg %p108
    %p115 = scmp.eq.s32.totalorder %s10, 2
    %p116 = por %p114, %p115
    %p117 = scmp.ne.s32.totalorder %s109, %s112
    %p118 = scmp.eq.s32.totalorder %s10, 0
    %p119 = por %p117, %p118
    %p120 = scmp.ne.s32.totalorder %s109, %s112
    %p121 = scmp.eq.s32.totalorder %s15, 2
    %p122 = por %p120, %p121
    %p123 = scmp.ne.s32.totalorder %s112, %s113
    %p124 = scmp.eq.s32.totalorder %s15, 0
    %p125 = por %p123, %p124
    %p126 = scmp.ne.s32.totalorder %s112, %s113
    %p127 = scmp.eq.s32.totalorder %s16, 2
    %p128 = por %p126, %p127
    %p130 = scmp.ne.s32.totalorder %s113, %s129
    %p131 = scmp.eq.s32.totalorder %s16, 0
    %p132 = por %p130, %p131
    %p133 = scmp.le.s32.totalorder 1, %s10
    %p134 = scmp.lt.s32.totalorder %s10, 4
    %p135 = pnand %p133, %p134
    %p136 = pneg %p135
    // Predicated region
    $region9: #{autoencoder_forward.5} parent=5 // pred_check
      _
    $region10: #{autoencoder_forward.5} parent=5 // pred_check_branch
      %138 = sbr.rel (%p135) target = $region12
    $region11: #{autoencoder_forward.5} parent=5 // pred_region
      %s139 = ssub.s32 %s10, 1
      // Predicated region
      $region13: #{autoencoder_forward.5} parent=11 // pred_check
        %p140 = pneg %p57
      $region14: #{autoencoder_forward.5} parent=11 // pred_check_branch
        %142 = sbr.rel (%p140) target = $region16
      $region15: #{autoencoder_forward.5} parent=11 // pred_region
        _
      $region16: #{autoencoder_forward.5} parent=11 // pred_fallthru
        _
      // Predicated region
      $region17: #{autoencoder_forward.5} parent=11 // pred_check
        %p143 = pneg %p78
      $region18: #{autoencoder_forward.5} parent=11 // pred_check_branch
        %145 = sbr.rel (%p143) target = $region20
      $region19: #{autoencoder_forward.5} parent=11 // pred_region
        _
      $region20: #{autoencoder_forward.5} parent=11 // pred_fallthru
        _
      // Predicated region
      $region21: #{autoencoder_forward.5} parent=11 // pred_check
        %p146 = pneg %p99
      $region22: #{autoencoder_forward.5} parent=11 // pred_check_branch
        %148 = sbr.rel (%p146) target = $region24
      $region23: #{autoencoder_forward.5} parent=11 // pred_region
        _
      $region24: #{autoencoder_forward.5} parent=11 // pred_fallthru
        _
    $region12: #{autoencoder_forward.5} parent=5 // pred_fallthru
      _
    %p149 = scmp.lt.s32.totalorder %s10, 3
    // Predicated region
    $region25: #{autoencoder_forward.5} parent=5 // pred_check
      %p150 = pneg %p149
    $region26: #{autoencoder_forward.5} parent=5 // pred_check_branch
      %152 = sbr.rel (%p150) target = $region28
    $region27: #{autoencoder_forward.5} parent=5 // pred_region
      // Predicated region
      $region29: #{autoencoder_forward.5} parent=27 // pred_check
        %p153 = pneg %p30
      $region30: #{autoencoder_forward.5} parent=27 // pred_check_branch
        %155 = sbr.rel (%p153) target = $region32
      $region31: #{autoencoder_forward.5} parent=27 // pred_region
        %s156 = smul.u32 2, %s10
        %p157 = scmp.lt.s32.totalorder %s156, 5
        %s158 = scalar_select %p157, %s156, 5
        %s159 = smul.addr %s158, 8
        %s160 = scalar_lea.vmem %s0, %s159
        %s161 = smul.u32 2, %s10
      $region32: #{autoencoder_forward.5} parent=27 // pred_fallthru
        _
    $region28: #{autoencoder_forward.5} parent=5 // pred_fallthru
      _
    %p162 = scmp.le.s32.totalorder 1, %s10
    %p163 = scmp.lt.s32.totalorder %s10, 4
    %p164 = pnand %p162, %p163
    %p165 = pneg %p164
    // Predicated region
    $region33: #{autoencoder_forward.5} parent=5 // pred_check
      _
    $region34: #{autoencoder_forward.5} parent=5 // pred_check_branch
      %167 = sbr.rel (%p164) target = $region36
    $region35: #{autoencoder_forward.5} parent=5 // pred_region
      %s168 = ssub.s32 %s10, 1
      %s169 = smul.u32 2, %s15
      %p170 = scmp.lt.s32.totalorder %s169, 5
      %s171 = scalar_select %p170, %s169, 5
      %s172 = smul.addr %s171, 8
      %s173 = scalar_lea.vmem %s0, %s172
      %p174 = pneg %p36
      %p175 = pneg %p33
      %p176 = pneg %p57
      %p177 = pneg %p54
      %p178 = pneg %p78
      %p179 = pneg %p75
      %p180 = pneg %p99
      %p181 = pneg %p96
      %p182 = pneg %p125
      %p183 = pneg %p122
      %s184 = smul.u32 2, %s15
      %p185 = scmp.lt.s32.totalorder %s184, 5
      %s186 = scalar_select %p185, %s184, 5
      %s187 = smul.addr %s186, 8
      %s188 = scalar_lea.vmem %s4, %s187
      %s189 = smul.u32 2, %s15
      %p190 = scmp.lt.s32.totalorder %s189, 5
      %s191 = scalar_select %p190, %s189, 5
      %s192 = smul.addr %s191, 8
      %s193 = scalar_lea.vmem %s0, %s192
      %s194 = smul.u32 2, %s15
      %s195 = smul.u32 2, %s15
      %p196 = scmp.lt.s32.totalorder %s195, 5
      %s197 = scalar_select %p196, %s195, 5
      %s198 = smul.addr %s197, 8
      %s199 = scalar_lea.vmem %s4, %s198
      %s200 = smul.u32 2, %s15
      %v201 = vld [vmem:[%s3] sm:$0x1]
      %v202 = vld [vmem:[%s3 + $0x1] sm:$0x1]
      %v203 = vld [vmem:[%s1] sm:$0x3]
      %v204 = vld [vmem:[%s1 + $0x2] sm:$0x3]
      %v205 = vld [vmem:[%s1 + $0x4] sm:$0x3]
      %vm206 = vcmask 123904
      %v207 = vsel %vm206, %v203, 0.0
      %v208 = vsel %vm206, %v204, 0.0
      %v209 = vadd.f32 %v207, %v208
      %v210 = vsel %vm206, %v205, 0.0
      %v211 = vadd.f32 %v209, %v210
      %v212 = vmul.f32 %v211, 0.025
      %v213 = vmul.f32 %v212, %v212
      %v215 = vrot.slane %v213, 7
      %v217 = vsub.f32 %v212, %v215
      %v218 = vmax.f32 %v217, 0.0
      %v219 = vadd.f32 %v218, 1e-05
      %v220 = vrsqrt.pop %v219
      %v221 = vmul.f32 %v220, %v219
      %v222 = vmul.f32 %v221, %v220
      %v223 = vmul.f32 0.5, %v222
      %v224 = vsub.f32 1.5, %v223
      %v225 = vmul.f32 %v220, %v224
      %vm226 = vweird.f32 %v219
      %vm227 = vweird.f32 %v220
      %vm228 = vmor %vm226, %vm227
      %v229 = vsel %vm228, %v220, %v225
      %v231 = vrot.slane %v229, 1
      %v233 = vmul.f32 %v201, %v231
      %v234 = vmul.f32 %v212, %v233
      %v235 = vsub.f32 %v202, %v234
      %v236 = vld [vmem:[%s193] sm:$0xff]
      %v237 = vld [vmem:[%s193 + $0x8] sm:$0xff]
      %v238 = vperm.slane %v233, 0
      %v239 = vmul.f32 %v236, %v238
      %v240 = vmul.f32 %v237, %v238
      %v241 = vperm.slane %v235, 0
      %v242 = vadd.f32 %v239, %v241
      %v243 = vadd.f32 %v240, %v241
      %v244 = vmax.f32 %v242, 0.0
      %v245 = vmax.f32 %v243, 0.0
      %v246 = vld [vmem:[%s2] sm:$0xff]
      %v247 = vld [vmem:[%s2 + $0x8] sm:$0xff]
      %v248 = vld [vmem:[%s3 + $0x2] sm:$0x1]
      %v249 = vperm.slane %v248, 0
      %vm250 = vcmask 130048
      %v252 = vsel %vm250, %v244, 0
      %v255 = vsel %vm250, %v245, 0
      %257 = vmatpush.msra.mxu0 0.0
      %258 = vmatpush.msra.mxu0 0.0
      %259 = vmatpush.msra.mxu0 0.0
      %260 = vmatpush.msra.mxu0 0.0
      %261 = vmatpush.msra.mxu0 0.0
      %262 = vmatpush.msra.mxu0 0.0
      %263 = vmatpush.msra.mxu0 0.0
      %264 = vmatpush.msra.mxu0 0.0
      %265 = vmatpush.msra.mxu0 0.0
      %266 = vmatpush.msra.mxu0 0.0
      %267 = vmatpush.msra.mxu0 0.0
      %268 = vmatpush.msra.mxu0 0.0
      %269 = vmatpush.msra.mxu0 0.0
      %270 = vmatpush.msra.mxu0 0.0
      %271 = vmatpush.msra.mxu0 %v247
      %272 = vmatpush.msra.mxu0 %v246
      %273 = vmatmul.f32.gmra.mxu0 %v252
      %v274 = vpop.f32.mrf.mxu0
      %v275 = vadd.f32 %v249, %v274
      %276 = vmatmul.f32.gmra.mxu0 %v255
      %v277 = vpop.f32.mrf.mxu0
      %v278 = vadd.f32 %v249, %v277
      %279 = vdwg.mxu0
      %v280 = vmax.f32 %v275, 0.0
      %v281 = vmax.f32 %v278, 0.0
      %s282 = scalar_lea.vmem %s2, 64
      %v283 = vld [vmem:[%s282] sm:$0xff]
      %v284 = vld [vmem:[%s282 + $0x8] sm:$0xff]
      %v285 = vld [vmem:[%s282 + $0x10] sm:$0xff]
      %v286 = vld [vmem:[%s282 + $0x18] sm:$0xff]
      %v287 = vld [vmem:[%s3 + $0x3] sm:$0x1]
      %v288 = vperm.slane %v287, 0
      %vm289 = vcmask 261120
      %v291 = vsel %vm289, %v280, 0
      %v294 = vsel %vm289, %v281, 0
      %296 = vmatpush.msra.mxu0 0.0
      %297 = vmatpush.msra.mxu0 0.0
      %298 = vmatpush.msra.mxu0 0.0
      %299 = vmatpush.msra.mxu0 0.0
      %300 = vmatpush.msra.mxu0 0.0
      %301 = vmatpush.msra.mxu0 0.0
      %302 = vmatpush.msra.mxu0 0.0
      %303 = vmatpush.msra.mxu0 0.0
      %304 = vmatpush.msra.mxu0 0.0
      %305 = vmatpush.msra.mxu0 0.0
      %306 = vmatpush.msra.mxu0 0.0
      %307 = vmatpush.msra.mxu0 0.0
      %308 = vmatpush.msra.mxu0 %v286
      %309 = vmatpush.msra.mxu0 %v285
      %310 = vmatpush.msra.mxu0 %v284
      %311 = vmatpush.msra.mxu0 %v283
      %312 = vmatmul.f32.gmra.mxu0 %v291
      %v313 = vpop.f32.mrf.mxu0
      %v314 = vadd.f32 %v288, %v313
      %315 = vmatmul.f32.gmra.mxu0 %v294
      %v316 = vpop.f32.mrf.mxu0
      %v317 = vadd.f32 %v288, %v316
      %318 = vdwg.mxu0
      %v319 = vmax.f32 %v314, 0.0
      %v320 = vmax.f32 %v317, 0.0
      %s321 = scalar_lea.vmem %s2, 128
      %v322 = vld [vmem:[%s321] sm:$0xff]
      %v323 = vld [vmem:[%s321 + $0x8] sm:$0xff]
      %v324 = vld [vmem:[%s321 + $0x10] sm:$0xff]
      %v325 = vld [vmem:[%s321 + $0x18] sm:$0xff]
      %v326 = vld [vmem:[%s321 + $0x20] sm:$0xff]
      %v327 = vld [vmem:[%s321 + $0x28] sm:$0xff]
      %v328 = vld [vmem:[%s321 + $0x30] sm:$0xff]
      %v329 = vld [vmem:[%s321 + $0x38] sm:$0xff]
      %v330 = vld [vmem:[%s3 + $0x4] sm:$0x1]
      %v331 = vperm.slane %v330, 0
      %vm332 = vcmask 523264
      %v334 = vsel %vm332, %v319, 0
      %v337 = vsel %vm332, %v320, 0
      %339 = vmatpush.msra.mxu0 0.0
      %340 = vmatpush.msra.mxu0 0.0
      %341 = vmatpush.msra.mxu0 0.0
      %342 = vmatpush.msra.mxu0 0.0
      %343 = vmatpush.msra.mxu0 0.0
      %344 = vmatpush.msra.mxu0 0.0
      %345 = vmatpush.msra.mxu0 0.0
      %346 = vmatpush.msra.mxu0 0.0
      %347 = vmatpush.msra.mxu0 %v329
      %348 = vmatpush.msra.mxu0 %v328
      %349 = vmatpush.msra.mxu0 %v327
      %350 = vmatpush.msra.mxu0 %v326
      %351 = vmatpush.msra.mxu0 %v325
      %352 = vmatpush.msra.mxu0 %v324
      %353 = vmatpush.msra.mxu0 %v323
      %354 = vmatpush.msra.mxu0 %v322
      %355 = vmatmul.f32.gmra.mxu0 %v334
      %v356 = vpop.f32.mrf.mxu0
      %v357 = vadd.f32 %v331, %v356
      %358 = vmatmul.f32.gmra.mxu0 %v337
      %v359 = vpop.f32.mrf.mxu0
      %v360 = vadd.f32 %v331, %v359
      %361 = vdwg.mxu0
      %362 = vst.msk [vmem:[%s199] sm:$0xff] %vm289, %v357
      %363 = vst.msk [vmem:[%s199 + $0x8] sm:$0xff] %vm289, %v360
      %s364 = smul.u32 2, %s15
      %p365 = scmp.lt.s32.totalorder %s364, 5
      %s366 = scalar_select %p365, %s364, 5
      %s367 = smul.addr %s366, 8
      %s368 = scalar_lea.vmem %s4, %s367
      // Predicated region
      $region37: #{autoencoder_forward.5} parent=35 // pred_check
        %p369 = pneg %p122
      $region38: #{autoencoder_forward.5} parent=35 // pred_check_branch
        %371 = sbr.rel (%p369) target = $region40
      $region39: #{autoencoder_forward.5} parent=35 // pred_region
        %s372 = smul.u32 2, %s15
      $region40: #{autoencoder_forward.5} parent=35 // pred_fallthru
        _
    $region36: #{autoencoder_forward.5} parent=5 // pred_fallthru
      _
    %p373 = scmp.le.s32.totalorder 2, %s10
    // Predicated region
    $region41: #{autoencoder_forward.5} parent=5 // pred_check
      %p374 = pneg %p373
    $region42: #{autoencoder_forward.5} parent=5 // pred_check_branch
      %376 = sbr.rel (%p374) target = $region44
    $region43: #{autoencoder_forward.5} parent=5 // pred_region
      %s377 = ssub.s32 %s10, 2
      // Predicated region
      $region45: #{autoencoder_forward.5} parent=43 // pred_check
        %p378 = pneg %p128
      $region46: #{autoencoder_forward.5} parent=43 // pred_check_branch
        %380 = sbr.rel (%p378) target = $region48
      $region47: #{autoencoder_forward.5} parent=43 // pred_region
        %s381 = smul.u32 2, %s16
        %p382 = scmp.lt.s32.totalorder %s381, 5
        %s383 = scalar_select %p382, %s381, 5
        %s384 = smul.addr %s383, 8
        %s385 = scalar_lea.vmem %s4, %s384
      $region48: #{autoencoder_forward.5} parent=43 // pred_fallthru
        _
    $region44: #{autoencoder_forward.5} parent=5 // pred_fallthru
      _
  $region6: #{autoencoder_forward.5} parent=0 // loop_footer
    %s14 = sadd.s32 1, %s10
  $region7: #{autoencoder_forward.5} parent=0 // loop_footer_branch
    %9 = sbr.rel target = $region3
  $region8: #{autoencoder_forward.5} parent=0 // loop_exit
    _

// kernel: autoencoder_forward.3
$region0: #{autoencoder_forward.3}
  #allocation0 [shape = 'u32[]', space=smem, size = 0x4, offset = 0x4, fixed_abs, tag = 'smem constant byte address 0x4 - core index']
  #allocation1 [shape = 'u32[72,128]{1,0:T(1,128)}', space=vmem, size = 0x9000, scoped, tag = 'internal scratch']
  %s0 = inlined_call_operand.vmem [shape: f32[48,32], index: 0, kind: input, shape index: {}]
  %s1 = inlined_call_operand.vmem [shape: f32[4,64,64], index: 1, kind: input, shape index: {}]
  %s2 = inlined_call_operand.vmem [shape: f32[4,64], index: 2, kind: input, shape index: {}]
  %s3 = inlined_call_operand.vmem [shape: f32[48,8], index: 3, kind: output, shape index: {0}]
  %s4 = inlined_call_operand.vmem [shape: f32[3,2,8], index: 4, kind: output, shape index: {1}]
  %5 = xla_tuple %s3, %s4
  %s6 = sld [smem:[#allocation0]]
  $region53: #{autoencoder_forward.3} parent=0
    _
  %s8 = ssub.s32 1, %s6
  %s9 = scalar_select 0, %s8, %s6
  loop: start=0, step=1, limit=5
  $region2: #{autoencoder_forward.3} parent=0 // loop_pre_header
    _
  $region3: #{autoencoder_forward.3} parent=0 // loop_header
    %s11 = sphi 0, %s15
    %p12 = scmp.ge.s32.totalorder %s11, 5
    %s21 = sphi 0, %s23
    %s24 = sphi 0, %s21
    %s25 = sphi 0, %s24
    %s41 = sphi 0, %s25
    %s45 = sphi 0, %s45
    %s47 = sphi 0, %s45
    %s48 = sphi 0, %s47
    %s62 = sphi 0, %s48
    %s66 = sphi 0, %s66
    %s68 = sphi 0, %s66
    %s69 = sphi 0, %s68
    %s83 = sphi 0, %s69
    %s89 = sphi 0, %s91
    %s92 = sphi 0, %s89
    %s93 = sphi 0, %s92
    %s109 = sphi 0, %s93
    %s115 = sphi 0, %s117
    %s118 = sphi 0, %s115
    %s119 = sphi 0, %s118
    %s135 = sphi 0, %s119
  $region4: #{autoencoder_forward.3} parent=0 // loop_header_branch
    %14 = sbr.rel (%p12) target = $region8
  $region5: #{autoencoder_forward.3} parent=0 // loop_body
    %s16 = ssub.s32 %s11, 1
    %s17 = ssub.s32 %s11, 2
    %s18 = sadd.s32 %s11, 1
    %s19 = ssub.s32 %s11, %s18
    %p20 = scmp.eq.s32.totalorder %s19, 0
    %s22 = sadd.s32 %s21, 1
    %s23 = scalar_select %p20, %s21, %s22
    %p26 = pneg %p20
    %p27 = scmp.eq.s32.totalorder %s11, 2
    %p28 = por %p26, %p27
    %p29 = scmp.ne.s32.totalorder %s21, %s24
    %p30 = scmp.eq.s32.totalorder %s11, 0
    %p31 = por %p29, %p30
    %p32 = scmp.ne.s32.totalorder %s21, %s24
    %p33 = scmp.eq.s32.totalorder %s16, 2
    %p34 = por %p32, %p33
    %p35 = scmp.ne.s32.totalorder %s24, %s25
    %p36 = scmp.eq.s32.totalorder %s16, 0
    %p37 = por %p35, %p36
    %p38 = scmp.ne.s32.totalorder %s24, %s25
    %p39 = scmp.eq.s32.totalorder %s17, 2
    %p40 = por %p38, %p39
    %p42 = scmp.ne.s32.totalorder %s25, %s41
    %p43 = scmp.eq.s32.totalorder %s17, 0
    %p44 = por %p42, %p43
    %s46 = sadd.s32 %s45, 1
    %p49 = scmp.eq.s32.totalorder %s11, 2
    %p50 = scmp.ne.s32.totalorder %s45, %s47
    %p51 = scmp.eq.s32.totalorder %s11, 0
    %p52 = por %p50, %p51
    %p53 = scmp.ne.s32.totalorder %s45, %s47
    %p54 = scmp.eq.s32.totalorder %s16, 2
    %p55 = por %p53, %p54
    %p56 = scmp.ne.s32.totalorder %s47, %s48
    %p57 = scmp.eq.s32.totalorder %s16, 0
    %p58 = por %p56, %p57
    %p59 = scmp.ne.s32.totalorder %s47, %s48
    %p60 = scmp.eq.s32.totalorder %s17, 2
    %p61 = por %p59, %p60
    %p63 = scmp.ne.s32.totalorder %s48, %s62
    %p64 = scmp.eq.s32.totalorder %s17, 0
    %p65 = por %p63, %p64
    %s67 = sadd.s32 %s66, 1
    %p70 = scmp.eq.s32.totalorder %s11, 2
    %p71 = scmp.ne.s32.totalorder %s66, %s68
    %p72 = scmp.eq.s32.totalorder %s11, 0
    %p73 = por %p71, %p72
    %p74 = scmp.ne.s32.totalorder %s66, %s68
    %p75 = scmp.eq.s32.totalorder %s16, 2
    %p76 = por %p74, %p75
    %p77 = scmp.ne.s32.totalorder %s68, %s69
    %p78 = scmp.eq.s32.totalorder %s16, 0
    %p79 = por %p77, %p78
    %p80 = scmp.ne.s32.totalorder %s68, %s69
    %p81 = scmp.eq.s32.totalorder %s17, 2
    %p82 = por %p80, %p81
    %p84 = scmp.ne.s32.totalorder %s69, %s83
    %p85 = scmp.eq.s32.totalorder %s17, 0
    %p86 = por %p84, %p85
    %s87 = ssub.s32 %s11, %s18
    %p88 = scmp.eq.s32.totalorder %s87, 0
    %s90 = sadd.s32 %s89, 1
    %s91 = scalar_select %p88, %s89, %s90
    %p94 = pneg %p88
    %p95 = scmp.eq.s32.totalorder %s11, 2
    %p96 = por %p94, %p95
    %p97 = scmp.ne.s32.totalorder %s89, %s92
    %p98 = scmp.eq.s32.totalorder %s11, 0
    %p99 = por %p97, %p98
    %p100 = scmp.ne.s32.totalorder %s89, %s92
    %p101 = scmp.eq.s32.totalorder %s16, 2
    %p102 = por %p100, %p101
    %p103 = scmp.ne.s32.totalorder %s92, %s93
    %p104 = scmp.eq.s32.totalorder %s16, 0
    %p105 = por %p103, %p104
    %p106 = scmp.ne.s32.totalorder %s92, %s93
    %p107 = scmp.eq.s32.totalorder %s17, 2
    %p108 = por %p106, %p107
    %p110 = scmp.ne.s32.totalorder %s93, %s109
    %p111 = scmp.eq.s32.totalorder %s17, 0
    %p112 = por %p110, %p111
    %s113 = ssub.s32 %s11, %s18
    %p114 = scmp.eq.s32.totalorder %s113, 0
    %s116 = sadd.s32 %s115, 1
    %s117 = scalar_select %p114, %s115, %s116
    %p120 = pneg %p114
    %p121 = scmp.eq.s32.totalorder %s11, 2
    %p122 = por %p120, %p121
    %p123 = scmp.ne.s32.totalorder %s115, %s118
    %p124 = scmp.eq.s32.totalorder %s11, 0
    %p125 = por %p123, %p124
    %p126 = scmp.ne.s32.totalorder %s115, %s118
    %p127 = scmp.eq.s32.totalorder %s16, 2
    %p128 = por %p126, %p127
    %p129 = scmp.ne.s32.totalorder %s118, %s119
    %p130 = scmp.eq.s32.totalorder %s16, 0
    %p131 = por %p129, %p130
    %p132 = scmp.ne.s32.totalorder %s118, %s119
    %p133 = scmp.eq.s32.totalorder %s17, 2
    %p134 = por %p132, %p133
    %p136 = scmp.ne.s32.totalorder %s119, %s135
    %p137 = scmp.eq.s32.totalorder %s17, 0
    %p138 = por %p136, %p137
    %p139 = scmp.le.s32.totalorder 1, %s11
    %p140 = scmp.lt.s32.totalorder %s11, 4
    %p141 = pnand %p139, %p140
    %p142 = pneg %p141
    // Predicated region
    $region9: #{autoencoder_forward.3} parent=5 // pred_check
      _
    $region10: #{autoencoder_forward.3} parent=5 // pred_check_branch
      %144 = sbr.rel (%p141) target = $region12
    $region11: #{autoencoder_forward.3} parent=5 // pred_region
      %s145 = ssub.s32 %s11, 1
      // Predicated region
      $region13: #{autoencoder_forward.3} parent=11 // pred_check
        %p146 = pneg %p58
      $region14: #{autoencoder_forward.3} parent=11 // pred_check_branch
        %148 = sbr.rel (%p146) target = $region16
      $region15: #{autoencoder_forward.3} parent=11 // pred_region
        _
      $region16: #{autoencoder_forward.3} parent=11 // pred_fallthru
        _
      // Predicated region
      $region17: #{autoencoder_forward.3} parent=11 // pred_check
        %p149 = pneg %p79
      $region18: #{autoencoder_forward.3} parent=11 // pred_check_branch
        %151 = sbr.rel (%p149) target = $region20
      $region19: #{autoencoder_forward.3} parent=11 // pred_region
        _
      $region20: #{autoencoder_forward.3} parent=11 // pred_fallthru
        _
    $region12: #{autoencoder_forward.3} parent=5 // pred_fallthru
      _
    %p152 = scmp.lt.s32.totalorder %s11, 3
    // Predicated region
    $region21: #{autoencoder_forward.3} parent=5 // pred_check
      %p153 = pneg %p152
    $region22: #{autoencoder_forward.3} parent=5 // pred_check_branch
      %155 = sbr.rel (%p153) target = $region24
    $region23: #{autoencoder_forward.3} parent=5 // pred_region
      // Predicated region
      $region25: #{autoencoder_forward.3} parent=23 // pred_check
        %p156 = pneg %p31
      $region26: #{autoencoder_forward.3} parent=23 // pred_check_branch
        %158 = sbr.rel (%p156) target = $region28
      $region27: #{autoencoder_forward.3} parent=23 // pred_region
        %s159 = smul.u32 2, %s11
        %p160 = scmp.lt.s32.totalorder %s159, 5
        %s161 = scalar_select %p160, %s159, 5
        %s162 = smul.addr %s161, 8
        %s163 = scalar_lea.vmem %s0, %s162
        %s164 = smul.u32 2, %s11
      $region28: #{autoencoder_forward.3} parent=23 // pred_fallthru
        _
    $region24: #{autoencoder_forward.3} parent=5 // pred_fallthru
      _
    %p165 = scmp.le.s32.totalorder 1, %s11
    %p166 = scmp.lt.s32.totalorder %s11, 4
    %p167 = pnand %p165, %p166
    %p168 = pneg %p167
    // Predicated region
    $region29: #{autoencoder_forward.3} parent=5 // pred_check
      _
    $region30: #{autoencoder_forward.3} parent=5 // pred_check_branch
      %170 = sbr.rel (%p167) target = $region32
    $region31: #{autoencoder_forward.3} parent=5 // pred_region
      %s171 = ssub.s32 %s11, 1
      %s172 = smul.u32 2, %s16
      %p173 = scmp.lt.s32.totalorder %s172, 5
      %s174 = scalar_select %p173, %s172, 5
      %s175 = smul.addr %s174, 8
      %s176 = scalar_lea.vmem %s0, %s175
      %p177 = pneg %p37
      %p178 = pneg %p34
      %p179 = pneg %p58
      %p180 = pneg %p55
      %p181 = pneg %p79
      %p182 = pneg %p76
      %p183 = pneg %p105
      %p184 = pneg %p102
      %s185 = smul.u32 2, %s16
      %p186 = scmp.lt.s32.totalorder %s185, 5
      %s187 = scalar_select %p186, %s185, 5
      %s188 = smul.addr %s187, 8
      %s189 = scalar_lea.vmem %s3, %s188
      %p190 = pneg %p131
      %p191 = pneg %p128
      %p192 = scmp.lt.s32.totalorder %s16, 2
      %s193 = scalar_select %p192, %s16, 2
      %s194 = smul.addr %s193, 2
      %s195 = scalar_lea.vmem %s4, %s194
      %s196 = smul.u32 2, %s16
      %p197 = scmp.lt.s32.totalorder %s196, 5
      %s198 = scalar_select %p197, %s196, 5
      %s199 = smul.addr %s198, 8
      %s200 = scalar_lea.vmem %s0, %s199
      %s201 = smul.u32 2, %s16
      %s202 = smul.u32 2, %s16
      %p203 = scmp.lt.s32.totalorder %s202, 5
      %s204 = scalar_select %p203, %s202, 5
      %s205 = smul.addr %s204, 8
      %s206 = scalar_lea.vmem %s3, %s205
      %s207 = smul.u32 2, %s16
      %p208 = scmp.lt.s32.totalorder %s16, 2
      %s209 = scalar_select %p208, %s16, 2
      %s210 = smul.addr %s209, 2
      %s211 = scalar_lea.vmem %s4, %s210
      %v212 = vld [vmem:[%s200] sm:$0xff]
      %v213 = vld [vmem:[%s200 + $0x8] sm:$0xff]
      %v214 = vld [vmem:[%s1] sm:$0xff]
      %v215 = vld [vmem:[%s1 + $0x8] sm:$0xff]
      %v216 = vld [vmem:[%s1 + $0x10] sm:$0xff]
      %v217 = vld [vmem:[%s1 + $0x18] sm:$0xff]
      %v218 = vld [vmem:[%s2] sm:$0x1]
      %v219 = vperm.slane %v218, 0
      %vm220 = vcmask 261120
      %v222 = vsel %vm220, %v212, 0
      %v225 = vsel %vm220, %v213, 0
      %227 = vmatpush.msra.mxu0 0.0
      %228 = vmatpush.msra.mxu0 0.0
      %229 = vmatpush.msra.mxu0 0.0
      %230 = vmatpush.msra.mxu0 0.0
      %231 = vmatpush.msra.mxu0 0.0
      %232 = vmatpush.msra.mxu0 0.0
      %233 = vmatpush.msra.mxu0 0.0
      %234 = vmatpush.msra.mxu0 0.0
      %235 = vmatpush.msra.mxu0 0.0
      %236 = vmatpush.msra.mxu0 0.0
      %237 = vmatpush.msra.mxu0 0.0
      %238 = vmatpush.msra.mxu0 0.0
      %239 = vmatpush.msra.mxu0 %v217
      %240 = vmatpush.msra.mxu0 %v216
      %241 = vmatpush.msra.mxu0 %v215
      %242 = vmatpush.msra.mxu0 %v214
      %243 = vmatmul.f32.gmra.mxu0 %v222
      %v244 = vpop.f32.mrf.mxu0
      %v245 = vadd.f32 %v219, %v244
      %246 = vmatmul.f32.gmra.mxu0 %v225
      %v247 = vpop.f32.mrf.mxu0
      %v248 = vadd.f32 %v219, %v247
      %249 = vdwg.mxu0
      %v250 = vmax.f32 %v245, 0.0
      %v251 = vmax.f32 %v248, 0.0
      %s252 = scalar_lea.vmem %s1, 64
      %v253 = vld [vmem:[%s252] sm:$0xff]
      %v254 = vld [vmem:[%s252 + $0x8] sm:$0xff]
      %v255 = vld [vmem:[%s252 + $0x10] sm:$0xff]
      %v256 = vld [vmem:[%s252 + $0x18] sm:$0xff]
      %v257 = vld [vmem:[%s252 + $0x20] sm:$0xff]
      %v258 = vld [vmem:[%s252 + $0x28] sm:$0xff]
      %v259 = vld [vmem:[%s252 + $0x30] sm:$0xff]
      %v260 = vld [vmem:[%s252 + $0x38] sm:$0xff]
      %v261 = vld [vmem:[%s2 + $0x1] sm:$0x1]
      %v262 = vperm.slane %v261, 0
      %vm263 = vcmask 523264
      %v265 = vsel %vm263, %v250, 0
      %v268 = vsel %vm263, %v251, 0
      %270 = vmatpush.msra.mxu0 0.0
      %271 = vmatpush.msra.mxu0 0.0
      %272 = vmatpush.msra.mxu0 0.0
      %273 = vmatpush.msra.mxu0 0.0
      %274 = vmatpush.msra.mxu0 0.0
      %275 = vmatpush.msra.mxu0 0.0
      %276 = vmatpush.msra.mxu0 0.0
      %277 = vmatpush.msra.mxu0 0.0
      %278 = vmatpush.msra.mxu0 %v260
      %279 = vmatpush.msra.mxu0 %v259
      %280 = vmatpush.msra.mxu0 %v258
      %281 = vmatpush.msra.mxu0 %v257
      %282 = vmatpush.msra.mxu0 %v256
      %283 = vmatpush.msra.mxu0 %v255
      %284 = vmatpush.msra.mxu0 %v254
      %285 = vmatpush.msra.mxu0 %v253
      %286 = vmatmul.f32.gmra.mxu0 %v265
      %v287 = vpop.f32.mrf.mxu0
      %v288 = vadd.f32 %v262, %v287
      %289 = vmatmul.f32.gmra.mxu0 %v268
      %v290 = vpop.f32.mrf.mxu0
      %v291 = vadd.f32 %v262, %v290
      %292 = vdwg.mxu0
      %v293 = vmax.f32 %v288, 0.0
      %v294 = vmax.f32 %v291, 0.0
      %s295 = scalar_lea.vmem %s1, 128
      %v296 = vld [vmem:[%s295] sm:$0xff]
      %v297 = vld [vmem:[%s295 + $0x8] sm:$0xff]
      %v298 = vld [vmem:[%s295 + $0x10] sm:$0xff]
      %v299 = vld [vmem:[%s295 + $0x18] sm:$0xff]
      %v300 = vld [vmem:[%s2 + $0x2] sm:$0x1]
      %v301 = vperm.slane %v300, 0
      %v303 = vsel %vm220, %v293, 0
      %v306 = vsel %vm220, %v294, 0
      %308 = vmatpush.msra.mxu0 0.0
      %309 = vmatpush.msra.mxu0 0.0
      %310 = vmatpush.msra.mxu0 0.0
      %311 = vmatpush.msra.mxu0 0.0
      %312 = vmatpush.msra.mxu0 0.0
      %313 = vmatpush.msra.mxu0 0.0
      %314 = vmatpush.msra.mxu0 0.0
      %315 = vmatpush.msra.mxu0 0.0
      %316 = vmatpush.msra.mxu0 0.0
      %317 = vmatpush.msra.mxu0 0.0
      %318 = vmatpush.msra.mxu0 0.0
      %319 = vmatpush.msra.mxu0 0.0
      %320 = vmatpush.msra.mxu0 %v299
      %321 = vmatpush.msra.mxu0 %v298
      %322 = vmatpush.msra.mxu0 %v297
      %323 = vmatpush.msra.mxu0 %v296
      %324 = vmatmul.f32.gmra.mxu0 %v303
      %v325 = vpop.f32.mrf.mxu0
      %v326 = vadd.f32 %v301, %v325
      %327 = vmatmul.f32.gmra.mxu0 %v306
      %v328 = vpop.f32.mrf.mxu0
      %v329 = vadd.f32 %v301, %v328
      %330 = vdwg.mxu0
      %v331 = vmax.f32 %v326, 0.0
      %v332 = vmax.f32 %v329, 0.0
      %s333 = scalar_lea.vmem %s1, 192
      %v334 = vld [vmem:[%s333] sm:$0xff]
      %v335 = vld [vmem:[%s333 + $0x8] sm:$0xff]
      %v336 = vld [vmem:[%s2 + $0x3] sm:$0x1]
      %v337 = vperm.slane %v336, 0
      %vm338 = vcmask 130048
      %v340 = vsel %vm338, %v331, 0
      %v343 = vsel %vm338, %v332, 0
      %345 = vmatpush.msra.mxu0 0.0
      %346 = vmatpush.msra.mxu0 0.0
      %347 = vmatpush.msra.mxu0 0.0
      %348 = vmatpush.msra.mxu0 0.0
      %349 = vmatpush.msra.mxu0 0.0
      %350 = vmatpush.msra.mxu0 0.0
      %351 = vmatpush.msra.mxu0 0.0
      %352 = vmatpush.msra.mxu0 0.0
      %353 = vmatpush.msra.mxu0 0.0
      %354 = vmatpush.msra.mxu0 0.0
      %355 = vmatpush.msra.mxu0 0.0
      %356 = vmatpush.msra.mxu0 0.0
      %357 = vmatpush.msra.mxu0 0.0
      %358 = vmatpush.msra.mxu0 0.0
      %359 = vmatpush.msra.mxu0 %v335
      %360 = vmatpush.msra.mxu0 %v334
      %361 = vmatmul.f32.gmra.mxu0 %v340
      %v362 = vpop.f32.mrf.mxu0
      %v363 = vadd.f32 %v337, %v362
      %364 = vmatmul.f32.gmra.mxu0 %v343
      %v365 = vpop.f32.mrf.mxu0
      %v366 = vadd.f32 %v337, %v365
      %367 = vdwg.mxu0
      %vm368 = vcmask 64512
      %369 = vst.msk [vmem:[%s206] sm:$0xff] %vm368, %v363
      %370 = vst.msk [vmem:[%s206 + $0x8] sm:$0xff] %vm368, %v366
      %v371 = vlaneseq
      %v372 = vshrl.u32 %v371, 7
      %v373 = vadd.s32 %v372, 8
      %s374 = smul.u32 %s16, 16
      %v375 = vstv %s374
      %v376 = vadd.s32 %v372, %v375
      %v377 = vadd.s32 %v373, %v375
      %vm378 = vcmp.lt.s32.totalorder %v376, 40
      %vm379 = vcmp.lt.s32.totalorder %v377, 40
      %v380 = vsel %vm378, 1, 0
      %v381 = vsel %vm379, 1, 0
      %v382 = vcvt.s32.f32 %v380
      %v383 = vcvt.s32.f32 %v381
      %v384 = vmul.f32 %v363, %v382
      %v385 = vmul.f32 %v366, %v383
      %v386 = vsel %vm368, %v384, 0.0
      %v387 = vsel %vm368, %v385, 0.0
      %v388 = vadd.f32 %v386, %v387
      %v389 = vrot.slane %v388, 4
      %v390 = vadd.f32 %v388, %v389
      %v391 = vrot.slane %v390, 2
      %v392 = vadd.f32 %v390, %v391
      %v393 = vrot.slane %v392, 1
      %v394 = vadd.f32 %v392, %v393
      %v395 = vmul.f32 %v384, %v363
      %v396 = vmul.f32 %v385, %v366
      %v397 = vsel %vm368, %v395, 0.0
      %v398 = vsel %vm368, %v396, 0.0
      %v399 = vadd.f32 %v397, %v398
      %v400 = vrot.slane %v399, 4
      %v401 = vadd.f32 %v399, %v400
      %v402 = vrot.slane %v401, 2
      %v403 = vadd.f32 %v401, %v402
      %v404 = vrot.slane %v403, 1
      %v405 = vadd.f32 %v403, %v404
      %vm406 = vcmask 1040384
      %v407 = vsel %vm406, %v394, %v405
      %vm408 = vcmask 58368
      %409 = vst.msk [vmem:[%s211] sm:$0x3] %vm408, %v407
      %s410 = smul.u32 2, %s16
      %p411 = scmp.lt.s32.totalorder %s410, 5
      %s412 = scalar_select %p411, %s410, 5
      %s413 = smul.addr %s412, 8
      %s414 = scalar_lea.vmem %s3, %s413
      %p415 = scmp.lt.s32.totalorder %s16, 2
      %s416 = scalar_select %p415, %s16, 2
      %s417 = smul.addr %s416, 2
      %s418 = scalar_lea.vmem %s4, %s417
      // Predicated region
      $region33: #{autoencoder_forward.3} parent=31 // pred_check
        %p419 = pneg %p102
      $region34: #{autoencoder_forward.3} parent=31 // pred_check_branch
        %421 = sbr.rel (%p419) target = $region36
      $region35: #{autoencoder_forward.3} parent=31 // pred_region
        %s422 = smul.u32 2, %s16
      $region36: #{autoencoder_forward.3} parent=31 // pred_fallthru
        _
      // Predicated region
      $region37: #{autoencoder_forward.3} parent=31 // pred_check
        %p423 = pneg %p128
      $region38: #{autoencoder_forward.3} parent=31 // pred_check_branch
        %425 = sbr.rel (%p423) target = $region40
      $region39: #{autoencoder_forward.3} parent=31 // pred_region
        _
      $region40: #{autoencoder_forward.3} parent=31 // pred_fallthru
        _
    $region32: #{autoencoder_forward.3} parent=5 // pred_fallthru
      _
    %p426 = scmp.le.s32.totalorder 2, %s11
    // Predicated region
    $region41: #{autoencoder_forward.3} parent=5 // pred_check
      %p427 = pneg %p426
    $region42: #{autoencoder_forward.3} parent=5 // pred_check_branch
      %429 = sbr.rel (%p427) target = $region44
    $region43: #{autoencoder_forward.3} parent=5 // pred_region
      %s430 = ssub.s32 %s11, 2
      // Predicated region
      $region45: #{autoencoder_forward.3} parent=43 // pred_check
        %p431 = pneg %p108
      $region46: #{autoencoder_forward.3} parent=43 // pred_check_branch
        %433 = sbr.rel (%p431) target = $region48
      $region47: #{autoencoder_forward.3} parent=43 // pred_region
        %s434 = smul.u32 2, %s17
        %p435 = scmp.lt.s32.totalorder %s434, 5
        %s436 = scalar_select %p435, %s434, 5
        %s437 = smul.addr %s436, 8
        %s438 = scalar_lea.vmem %s3, %s437
      $region48: #{autoencoder_forward.3} parent=43 // pred_fallthru
        _
      // Predicated region
      $region49: #{autoencoder_forward.3} parent=43 // pred_check
        %p439 = pneg %p134
      $region50: #{autoencoder_forward.3} parent=43 // pred_check_branch
        %441 = sbr.rel (%p439) target = $region52
      $region51: #{autoencoder_forward.3} parent=43 // pred_region
        %p442 = scmp.lt.s32.totalorder %s17, 2
        %s443 = scalar_select %p442, %s17, 2
        %s444 = smul.addr %s443, 2
        %s445 = scalar_lea.vmem %s4, %s444
      $region52: #{autoencoder_forward.3} parent=43 // pred_fallthru
        _
    $region44: #{autoencoder_forward.3} parent=5 // pred_fallthru
      _
  $region6: #{autoencoder_forward.3} parent=0 // loop_footer
    %s15 = sadd.s32 1, %s11
  $region7: #{autoencoder_forward.3} parent=0 // loop_footer_branch
    %10 = sbr.rel target = $region3
  $region8: #{autoencoder_forward.3} parent=0 // loop_exit
    _

</llo_original>
